<compile_context>
chip_gen: v7x
topology: tpu7x:2x2x1
jax: 0.10.0
libtpu: 0.0.40
codegen_flags: <defaults>
</compile_context>

<pallas_src>
import jax
import jax.numpy as jnp
from jax.experimental import pallas as pl
from jax.experimental.pallas import tpu as pltpu


def _softplus(x):
    # Matches torch.nn.Softplus(beta=1, threshold=20).
    return jnp.where(x > 20.0, x, jnp.log1p(jnp.exp(jnp.minimum(x, 20.0))))


def make_decoder_kernel(B, L, H, Y, n_fc):
    """Build the kernel for static (B, L, H, Y) and number of FC layers."""

    def kernel(*refs):
        # ref layout:
        #   embed_out [B,L,E], zs [B,L,Z], h0 [1,H],
        #   w_ih_fused [E+Z, 3H], b_i_fused [1, 3H],   (r|z|n; b_hh_{r,z} folded in)
        #   w_hh_fused [H, 3H],  b_hn [1, H],
        #   (w_fc, b_fc) * n_fc,
        #   w_head_pad [F, out_pad], b_head_pad [1, out_pad],   (mu|var, zero-padded)
        #   out_ref [B*L, out_pad]
        (e_ref, z_ref, h0_ref, w_ih_ref, b_i_ref, w_hh_ref, b_hn_ref) = refs[:7]
        fc_refs = refs[7:7 + 2 * n_fc]
        w_head_ref, b_head_ref, out_ref = refs[7 + 2 * n_fc:]

        E = e_ref.shape[-1]
        Z = z_ref.shape[-1]

        # ---- Prologue: single fused input projection over all (b, t).
        e2 = e_ref[...].reshape(B * L, E).astype(jnp.float32)
        z2 = z_ref[...].reshape(B * L, Z).astype(jnp.float32)
        x2 = jnp.concatenate([e2, z2], axis=-1)          # in-vreg concat, no HBM concat
        gi = (jnp.dot(x2, w_ih_ref[...], preferred_element_type=jnp.float32)
              + b_i_ref[...]).reshape(B, L, 3 * H)
        # Pre-slice per gate once so the serial loop only slices the recurrent result.
        gi_r = gi[:, :, 0 * H:1 * H]
        gi_z = gi[:, :, 1 * H:2 * H]
        gi_n = gi[:, :, 2 * H:3 * H]

        whh = w_hh_ref[...]                              # [H, 3H] fused r|z|n
        bhn = b_hn_ref[...]                              # [1, H]
        h = jnp.broadcast_to(h0_ref[...], (B, H)).astype(jnp.float32)

        # ---- Serial GRU recurrence: ONE fused [B,H] x [H,3H] MXU dot per step;
        # h kept in vregs (no VMEM scratch, no masked sub-(8,128) stores).
        hs = []
        for t in range(L):
            gh = jnp.dot(h, whh, preferred_element_type=jnp.float32)   # [B, 3H]
            r = jax.nn.sigmoid(gi_r[:, t, :] + gh[:, 0 * H:1 * H])
            zg = jax.nn.sigmoid(gi_z[:, t, :] + gh[:, 1 * H:2 * H])
            n = jnp.tanh(gi_n[:, t, :] + r * (gh[:, 2 * H:3 * H] + bhn))
            h = (1.0 - zg) * n + zg * h
            hs.append(h)

        # ---- Epilogue: batched FC stack + fused, lane-padded mu|var head.
        f = jnp.stack(hs, axis=1).reshape(B * L, H)       # [B*L, H], rows = b*L + t
        for i in range(n_fc):
            w = fc_refs[2 * i][...]
            b = fc_refs[2 * i + 1][...]
            f = jnp.maximum(
                jnp.dot(f, w, preferred_element_type=jnp.float32) + b, 0.0)

        out = (jnp.dot(f, w_head_ref[...], preferred_element_type=jnp.float32)
               + b_head_ref[...])                         # [B*L, out_pad], lane-dense
        # softplus only on the var lanes [Y, 2Y); mu lanes (and zero padding) pass through.
        lane = jax.lax.broadcasted_iota(jnp.int32, out.shape, 1)
        out = jnp.where((lane >= Y) & (lane < 2 * Y), _softplus(out), out)
        out_ref[...] = out.astype(out_ref.dtype)

    return kernel


def decoder_rnn_forward(y0, embed_out, zs, params):
    """Pallas forward pass. Returns (mu, var), each [B, L, y_dim]."""
    del y0  # unused in the reference forward as well
    B, L, E = embed_out.shape
    Z = zs.shape[-1]
    H = params["w_hh_r"].shape[0]
    F = params["w_mu"].shape[0]
    Y = params["w_mu"].shape[1]
    fc_ws, fc_bs = params["fc_ws"], params["fc_bs"]
    n_fc = len(fc_ws)
    f32 = jnp.float32

    # Fused per-gate input weights/biases (order r|z|n). b_hh_{r,z} are folded into
    # the hoisted projection bias; b_hh_n must stay inside r*(h@W_hn + b_hn).
    w_ih = jnp.concatenate(
        [params["w_ih_r"], params["w_ih_z"], params["w_ih_n"]], axis=1).astype(f32)
    b_i = jnp.concatenate(
        [params["b_ih_r"] + params["b_hh_r"],
         params["b_ih_z"] + params["b_hh_z"],
         params["b_ih_n"]], axis=1).astype(f32)
    w_hh = jnp.concatenate(
        [params["w_hh_r"], params["w_hh_z"], params["w_hh_n"]], axis=1).astype(f32)
    b_hn = params["b_hh_n"].astype(f32)

    # Fused mu|var head, zero-padded to a lane-dense (multiple-of-128) output width
    # so the final store is a full-width vst; the pad lanes are sliced off below.
    out_pad = max(128, ((2 * Y + 127) // 128) * 128)
    w_head = jnp.concatenate([params["w_mu"], params["w_var"]], axis=1).astype(f32)
    b_head = jnp.concatenate([params["b_mu"], params["b_var"]], axis=1).astype(f32)
    w_head = jnp.pad(w_head, ((0, 0), (0, out_pad - 2 * Y)))
    b_head = jnp.pad(b_head, ((0, 0), (0, out_pad - 2 * Y)))

    h0 = params["h0"].reshape(1, H).astype(f32)

    inputs = [embed_out.astype(f32), zs.astype(f32), h0, w_ih, b_i, w_hh, b_hn]
    for w, b in zip(fc_ws, fc_bs):
        inputs += [w.astype(f32), b.astype(f32)]
    inputs += [w_head, b_head]

    kernel = make_decoder_kernel(B, L, H, Y, n_fc)

    flops = (2 * B * L * (E + Z) * 3 * H                       # input projection
             + 2 * L * B * H * 3 * H                           # recurrent dots
             + sum(2 * B * L * int(w.shape[0]) * int(w.shape[1]) for w in fc_ws)
             + 2 * B * L * F * out_pad)                        # fused head
    transcendentals = L * B * 3 * H + 2 * B * L * out_pad
    bytes_accessed = 4 * (sum(int(x.size) for x in inputs) + B * L * out_pad)

    vmem = pl.BlockSpec(memory_space=pltpu.MemorySpace.VMEM)
    out2d = pl.pallas_call(
        kernel,
        out_shape=jax.ShapeDtypeStruct((B * L, out_pad), f32),
        in_specs=[vmem] * len(inputs),
        out_specs=vmem,
        cost_estimate=pl.CostEstimate(
            flops=flops,
            transcendentals=transcendentals,
            bytes_accessed=bytes_accessed),
    )(*inputs)

    out = out2d[:, :2 * Y].reshape(B, L, 2 * Y)   # wrapper-side layout plumbing only
    return out[..., :Y], out[..., Y:]


def reference_forward(y0, embed_out, zs, params):
    """Pure-JAX reference (mirrors PyTorch GRU + Sequential + heads)."""
    del y0
    x = jnp.concatenate([embed_out, zs], axis=-1).astype(jnp.float32)
    B = x.shape[0]
    H = params["w_hh_r"].shape[0]
    h0 = jnp.broadcast_to(params["h0"].reshape(1, H), (B, H)).astype(jnp.float32)

    def step(h, x_t):
        i_r = x_t @ params["w_ih_r"] + params["b_ih_r"]
        i_z = x_t @ params["w_ih_z"] + params["b_ih_z"]
        i_n = x_t @ params["w_ih_n"] + params["b_ih_n"]
        h_r = h @ params["w_hh_r"] + params["b_hh_r"]
        h_z = h @ params["w_hh_z"] + params["b_hh_z"]
        h_n = h @ params["w_hh_n"] + params["b_hh_n"]
        r = jax.nn.sigmoid(i_r + h_r)
        z = jax.nn.sigmoid(i_z + h_z)
        n = jnp.tanh(i_n + r * h_n)
        h_new = (1.0 - z) * n + z * h
        return h_new, h_new

    _, hs = jax.lax.scan(step, h0, jnp.transpose(x, (1, 0, 2)))
    hs = jnp.transpose(hs, (1, 0, 2))  # [B, L, H]

    f = hs
    for w, b in zip(params["fc_ws"], params["fc_bs"]):
        f = jnp.maximum(f @ w + b, 0.0)
    mu = f @ params["w_mu"] + params["b_mu"]
    var = _softplus(f @ params["w_var"] + params["b_var"])
    return mu, var


def init_params(key, embed_out_dim, z_dim, hidden_dims, y_dim, num_rnn=1):
    assert num_rnn == 1, "only num_rnn == 1 supported"
    D = embed_out_dim + z_dim
    H = hidden_dims[0]

    keys = iter(jax.random.split(key, 64))

    def uniform(shape, bound):
        return jax.random.uniform(next(keys), shape, jnp.float32, -bound, bound)

    kg = 1.0 / float(H) ** 0.5
    params = {}
    # GRU weights stored transposed and per-gate: [in, H]; biases [1, H].
    for gate in ("r", "z", "n"):
        params[f"w_ih_{gate}"] = uniform((D, H), kg)
        params[f"w_hh_{gate}"] = uniform((H, H), kg)
        params[f"b_ih_{gate}"] = uniform((1, H), kg)
        params[f"b_hh_{gate}"] = uniform((1, H), kg)
    # h0 parameter (zeros in the PyTorch init; use small random here to exercise it).
    params["h0"] = 0.1 * jax.random.normal(next(keys), (num_rnn, 1, H), jnp.float32)

    fc_ws, fc_bs = [], []
    in_dim = H
    for hdim in hidden_dims[1:]:
        kl = 1.0 / float(in_dim) ** 0.5
        fc_ws.append(uniform((in_dim, hdim), kl))
        fc_bs.append(uniform((1, hdim), kl))
        in_dim = hdim
    params["fc_ws"] = fc_ws
    params["fc_bs"] = fc_bs

    kh = 1.0 / float(in_dim) ** 0.5
    params["w_mu"] = uniform((in_dim, y_dim), kh)
    params["b_mu"] = uniform((1, y_dim), kh)
    params["w_var"] = uniform((in_dim, y_dim), kh)
    params["b_var"] = uniform((1, y_dim), kh)
    return params


if __name__ == "__main__":
    B, L = 2, 8
    embed_out_dim, z_dim = 8, 8
    hidden_dims = [32, 32]
    y_dim = 8

    key = jax.random.PRNGKey(0)
    kp, k1, k2, k3 = jax.random.split(key, 4)

    params = init_params(kp, embed_out_dim, z_dim, hidden_dims, y_dim, num_rnn=1)

    y0 = jax.random.normal(k1, (B, y_dim), jnp.float32)
    embed_out = jax.random.normal(k2, (B, L, embed_out_dim), jnp.float32)
    zs = jax.random.normal(k3, (B, L, z_dim), jnp.float32)

    fwd = jax.jit(decoder_rnn_forward)
    mu, var = fwd(y0, embed_out, zs, params)
    mu = jax.block_until_ready(mu)
    var = jax.block_until_ready(var)

    mu_ref, var_ref = reference_forward(y0, embed_out, zs, params)
    assert mu.shape == (B, L, y_dim) and var.shape == (B, L, y_dim)
    assert jnp.allclose(mu, mu_ref, rtol=1e-3, atol=1e-4), "mu mismatch"
    assert jnp.allclose(var, var_ref, rtol=1e-3, atol=1e-4), "var mismatch"
    assert bool(jnp.all(var > 0.0)), "softplus output must be positive"

    print("KERNEL_OK")
</pallas_src>

<mosaic_0001>
module attributes {stable_mosaic.version = 11 : i64} {
  func.func @kernel(%arg0: memref<2x8x8xf32, #tpu.memory_space<vmem>>, %arg1: memref<2x8x8xf32, #tpu.memory_space<vmem>>, %arg2: memref<1x32xf32, #tpu.memory_space<vmem>>, %arg3: memref<16x96xf32, #tpu.memory_space<vmem>>, %arg4: memref<1x96xf32, #tpu.memory_space<vmem>>, %arg5: memref<32x96xf32, #tpu.memory_space<vmem>>, %arg6: memref<1x32xf32, #tpu.memory_space<vmem>>, %arg7: memref<32x32xf32, #tpu.memory_space<vmem>>, %arg8: memref<1x32xf32, #tpu.memory_space<vmem>>, %arg9: memref<32x128xf32, #tpu.memory_space<vmem>>, %arg10: memref<1x128xf32, #tpu.memory_space<vmem>>, %arg11: memref<16x128xf32, #tpu.memory_space<vmem>>) attributes {dimension_semantics = [], scalar_prefetch = 0 : i64, scratch_operands = 0 : i64, tpu.core_type = #tpu.core_type<tc>} {
    %c0 = arith.constant 0 : index
    %c0_0 = arith.constant 0 : index
    %c0_1 = arith.constant 0 : index
    %0 = vector.load %arg0[%c0, %c0_0, %c0_1] : memref<2x8x8xf32, #tpu.memory_space<vmem>>, vector<2x8x8xf32>
    %1 = vector.shape_cast %0 : vector<2x8x8xf32> to vector<16x8xf32>
    %c0_2 = arith.constant 0 : index
    %c0_3 = arith.constant 0 : index
    %c0_4 = arith.constant 0 : index
    %2 = vector.load %arg1[%c0_2, %c0_3, %c0_4] : memref<2x8x8xf32, #tpu.memory_space<vmem>>, vector<2x8x8xf32>
    %3 = vector.shape_cast %2 : vector<2x8x8xf32> to vector<16x8xf32>
    %4 = tpu.concatenate %1, %3 in 1 : vector<16x8xf32>, vector<16x8xf32> -> vector<16x16xf32>
    %c0_5 = arith.constant 0 : index
    %c0_6 = arith.constant 0 : index
    %5 = vector.load %arg3[%c0_5, %c0_6] : memref<16x96xf32, #tpu.memory_space<vmem>>, vector<16x96xf32>
    %cst = arith.constant dense<0.000000e+00> : vector<16x96xf32>
    %6 = tpu.matmul %4, %5, %cst {dimension_numbers = #tpu.dot_dimension_numbers<[1], [0], [0], [1], [0, 0, 1, 1], [], []>} : vector<16x16xf32>, vector<16x96xf32>, vector<16x96xf32> -> vector<16x96xf32>
    %c0_7 = arith.constant 0 : index
    %c0_8 = arith.constant 0 : index
    %7 = vector.load %arg4[%c0_7, %c0_8] : memref<1x96xf32, #tpu.memory_space<vmem>>, vector<1x96xf32>
    %8 = vector.broadcast %7 : vector<1x96xf32> to vector<16x96xf32>
    %9 = arith.addf %6, %8 : vector<16x96xf32>
    %10 = vector.shape_cast %9 : vector<16x96xf32> to vector<2x8x96xf32>
    %11 = vector.extract_strided_slice %10 {offsets = [0, 0, 0], sizes = [2, 8, 32], strides = [1, 1, 1]} : vector<2x8x96xf32> to vector<2x8x32xf32>
    %12 = vector.extract_strided_slice %10 {offsets = [0, 0, 32], sizes = [2, 8, 32], strides = [1, 1, 1]} : vector<2x8x96xf32> to vector<2x8x32xf32>
    %13 = vector.extract_strided_slice %10 {offsets = [0, 0, 64], sizes = [2, 8, 32], strides = [1, 1, 1]} : vector<2x8x96xf32> to vector<2x8x32xf32>
    %c0_9 = arith.constant 0 : index
    %c0_10 = arith.constant 0 : index
    %14 = vector.load %arg5[%c0_9, %c0_10] : memref<32x96xf32, #tpu.memory_space<vmem>>, vector<32x96xf32>
    %c0_11 = arith.constant 0 : index
    %c0_12 = arith.constant 0 : index
    %15 = vector.load %arg6[%c0_11, %c0_12] : memref<1x32xf32, #tpu.memory_space<vmem>>, vector<1x32xf32>
    %c0_13 = arith.constant 0 : index
    %c0_14 = arith.constant 0 : index
    %16 = vector.load %arg2[%c0_13, %c0_14] : memref<1x32xf32, #tpu.memory_space<vmem>>, vector<1x32xf32>
    %17 = vector.shape_cast %16 : vector<1x32xf32> to vector<1x32xf32>
    %18 = vector.broadcast %17 : vector<1x32xf32> to vector<2x32xf32>
    %cst_15 = arith.constant dense<0.000000e+00> : vector<2x96xf32>
    %19 = tpu.matmul %18, %14, %cst_15 {dimension_numbers = #tpu.dot_dimension_numbers<[1], [0], [0], [1], [0, 0, 1, 1], [], []>} : vector<2x32xf32>, vector<32x96xf32>, vector<2x96xf32> -> vector<2x96xf32>
    %20 = vector.extract_strided_slice %11 {offsets = [0, 0, 0], sizes = [2, 1, 32], strides = [1, 1, 1]} : vector<2x8x32xf32> to vector<2x1x32xf32>
    %21 = vector.shape_cast %20 : vector<2x1x32xf32> to vector<2x32xf32>
    %22 = vector.extract_strided_slice %19 {offsets = [0, 0], sizes = [2, 32], strides = [1, 1]} : vector<2x96xf32> to vector<2x32xf32>
    %23 = arith.addf %21, %22 : vector<2x32xf32>
    %24 = arith.negf %23 : vector<2x32xf32>
    %25 = math.exp %24 : vector<2x32xf32>
    %cst_16 = arith.constant 1.000000e+00 : f32
    %26 = vector.broadcast %cst_16 : f32 to vector<2x32xf32>
    %27 = arith.addf %26, %25 : vector<2x32xf32>
    %28 = arith.divf %26, %27 : vector<2x32xf32>
    %29 = vector.extract_strided_slice %12 {offsets = [0, 0, 0], sizes = [2, 1, 32], strides = [1, 1, 1]} : vector<2x8x32xf32> to vector<2x1x32xf32>
    %30 = vector.shape_cast %29 : vector<2x1x32xf32> to vector<2x32xf32>
    %31 = vector.extract_strided_slice %19 {offsets = [0, 32], sizes = [2, 32], strides = [1, 1]} : vector<2x96xf32> to vector<2x32xf32>
    %32 = arith.addf %30, %31 : vector<2x32xf32>
    %33 = arith.negf %32 : vector<2x32xf32>
    %34 = math.exp %33 : vector<2x32xf32>
    %cst_17 = arith.constant 1.000000e+00 : f32
    %35 = vector.broadcast %cst_17 : f32 to vector<2x32xf32>
    %36 = arith.addf %35, %34 : vector<2x32xf32>
    %37 = arith.divf %35, %36 : vector<2x32xf32>
    %38 = vector.extract_strided_slice %13 {offsets = [0, 0, 0], sizes = [2, 1, 32], strides = [1, 1, 1]} : vector<2x8x32xf32> to vector<2x1x32xf32>
    %39 = vector.shape_cast %38 : vector<2x1x32xf32> to vector<2x32xf32>
    %40 = vector.extract_strided_slice %19 {offsets = [0, 64], sizes = [2, 32], strides = [1, 1]} : vector<2x96xf32> to vector<2x32xf32>
    %41 = vector.broadcast %15 : vector<1x32xf32> to vector<2x32xf32>
    %42 = arith.addf %40, %41 : vector<2x32xf32>
    %43 = arith.mulf %28, %42 : vector<2x32xf32>
    %44 = arith.addf %39, %43 : vector<2x32xf32>
    %45 = math.tanh %44 : vector<2x32xf32>
    %cst_18 = arith.constant 1.000000e+00 : f32
    %46 = vector.broadcast %cst_18 : f32 to vector<2x32xf32>
    %47 = arith.subf %46, %37 : vector<2x32xf32>
    %48 = arith.mulf %47, %45 : vector<2x32xf32>
    %49 = arith.mulf %37, %18 : vector<2x32xf32>
    %50 = arith.addf %48, %49 : vector<2x32xf32>
    %cst_19 = arith.constant dense<0.000000e+00> : vector<2x96xf32>
    %51 = tpu.matmul %50, %14, %cst_19 {dimension_numbers = #tpu.dot_dimension_numbers<[1], [0], [0], [1], [0, 0, 1, 1], [], []>} : vector<2x32xf32>, vector<32x96xf32>, vector<2x96xf32> -> vector<2x96xf32>
    %52 = vector.extract_strided_slice %11 {offsets = [0, 1, 0], sizes = [2, 1, 32], strides = [1, 1, 1]} : vector<2x8x32xf32> to vector<2x1x32xf32>
    %53 = vector.shape_cast %52 : vector<2x1x32xf32> to vector<2x32xf32>
    %54 = vector.extract_strided_slice %51 {offsets = [0, 0], sizes = [2, 32], strides = [1, 1]} : vector<2x96xf32> to vector<2x32xf32>
    %55 = arith.addf %53, %54 : vector<2x32xf32>
    %56 = arith.negf %55 : vector<2x32xf32>
    %57 = math.exp %56 : vector<2x32xf32>
    %cst_20 = arith.constant 1.000000e+00 : f32
    %58 = vector.broadcast %cst_20 : f32 to vector<2x32xf32>
    %59 = arith.addf %58, %57 : vector<2x32xf32>
    %60 = arith.divf %58, %59 : vector<2x32xf32>
    %61 = vector.extract_strided_slice %12 {offsets = [0, 1, 0], sizes = [2, 1, 32], strides = [1, 1, 1]} : vector<2x8x32xf32> to vector<2x1x32xf32>
    %62 = vector.shape_cast %61 : vector<2x1x32xf32> to vector<2x32xf32>
    %63 = vector.extract_strided_slice %51 {offsets = [0, 32], sizes = [2, 32], strides = [1, 1]} : vector<2x96xf32> to vector<2x32xf32>
    %64 = arith.addf %62, %63 : vector<2x32xf32>
    %65 = arith.negf %64 : vector<2x32xf32>
    %66 = math.exp %65 : vector<2x32xf32>
    %cst_21 = arith.constant 1.000000e+00 : f32
    %67 = vector.broadcast %cst_21 : f32 to vector<2x32xf32>
    %68 = arith.addf %67, %66 : vector<2x32xf32>
    %69 = arith.divf %67, %68 : vector<2x32xf32>
    %70 = vector.extract_strided_slice %13 {offsets = [0, 1, 0], sizes = [2, 1, 32], strides = [1, 1, 1]} : vector<2x8x32xf32> to vector<2x1x32xf32>
    %71 = vector.shape_cast %70 : vector<2x1x32xf32> to vector<2x32xf32>
    %72 = vector.extract_strided_slice %51 {offsets = [0, 64], sizes = [2, 32], strides = [1, 1]} : vector<2x96xf32> to vector<2x32xf32>
    %73 = vector.broadcast %15 : vector<1x32xf32> to vector<2x32xf32>
    %74 = arith.addf %72, %73 : vector<2x32xf32>
    %75 = arith.mulf %60, %74 : vector<2x32xf32>
    %76 = arith.addf %71, %75 : vector<2x32xf32>
    %77 = math.tanh %76 : vector<2x32xf32>
    %cst_22 = arith.constant 1.000000e+00 : f32
    %78 = vector.broadcast %cst_22 : f32 to vector<2x32xf32>
    %79 = arith.subf %78, %69 : vector<2x32xf32>
    %80 = arith.mulf %79, %77 : vector<2x32xf32>
    %81 = arith.mulf %69, %50 : vector<2x32xf32>
    %82 = arith.addf %80, %81 : vector<2x32xf32>
    %cst_23 = arith.constant dense<0.000000e+00> : vector<2x96xf32>
    %83 = tpu.matmul %82, %14, %cst_23 {dimension_numbers = #tpu.dot_dimension_numbers<[1], [0], [0], [1], [0, 0, 1, 1], [], []>} : vector<2x32xf32>, vector<32x96xf32>, vector<2x96xf32> -> vector<2x96xf32>
    %84 = vector.extract_strided_slice %11 {offsets = [0, 2, 0], sizes = [2, 1, 32], strides = [1, 1, 1]} : vector<2x8x32xf32> to vector<2x1x32xf32>
    %85 = vector.shape_cast %84 : vector<2x1x32xf32> to vector<2x32xf32>
    %86 = vector.extract_strided_slice %83 {offsets = [0, 0], sizes = [2, 32], strides = [1, 1]} : vector<2x96xf32> to vector<2x32xf32>
    %87 = arith.addf %85, %86 : vector<2x32xf32>
    %88 = arith.negf %87 : vector<2x32xf32>
    %89 = math.exp %88 : vector<2x32xf32>
    %cst_24 = arith.constant 1.000000e+00 : f32
    %90 = vector.broadcast %cst_24 : f32 to vector<2x32xf32>
    %91 = arith.addf %90, %89 : vector<2x32xf32>
    %92 = arith.divf %90, %91 : vector<2x32xf32>
    %93 = vector.extract_strided_slice %12 {offsets = [0, 2, 0], sizes = [2, 1, 32], strides = [1, 1, 1]} : vector<2x8x32xf32> to vector<2x1x32xf32>
    %94 = vector.shape_cast %93 : vector<2x1x32xf32> to vector<2x32xf32>
    %95 = vector.extract_strided_slice %83 {offsets = [0, 32], sizes = [2, 32], strides = [1, 1]} : vector<2x96xf32> to vector<2x32xf32>
    %96 = arith.addf %94, %95 : vector<2x32xf32>
    %97 = arith.negf %96 : vector<2x32xf32>
    %98 = math.exp %97 : vector<2x32xf32>
    %cst_25 = arith.constant 1.000000e+00 : f32
    %99 = vector.broadcast %cst_25 : f32 to vector<2x32xf32>
    %100 = arith.addf %99, %98 : vector<2x32xf32>
    %101 = arith.divf %99, %100 : vector<2x32xf32>
    %102 = vector.extract_strided_slice %13 {offsets = [0, 2, 0], sizes = [2, 1, 32], strides = [1, 1, 1]} : vector<2x8x32xf32> to vector<2x1x32xf32>
    %103 = vector.shape_cast %102 : vector<2x1x32xf32> to vector<2x32xf32>
    %104 = vector.extract_strided_slice %83 {offsets = [0, 64], sizes = [2, 32], strides = [1, 1]} : vector<2x96xf32> to vector<2x32xf32>
    %105 = vector.broadcast %15 : vector<1x32xf32> to vector<2x32xf32>
    %106 = arith.addf %104, %105 : vector<2x32xf32>
    %107 = arith.mulf %92, %106 : vector<2x32xf32>
    %108 = arith.addf %103, %107 : vector<2x32xf32>
    %109 = math.tanh %108 : vector<2x32xf32>
    %cst_26 = arith.constant 1.000000e+00 : f32
    %110 = vector.broadcast %cst_26 : f32 to vector<2x32xf32>
    %111 = arith.subf %110, %101 : vector<2x32xf32>
    %112 = arith.mulf %111, %109 : vector<2x32xf32>
    %113 = arith.mulf %101, %82 : vector<2x32xf32>
    %114 = arith.addf %112, %113 : vector<2x32xf32>
    %cst_27 = arith.constant dense<0.000000e+00> : vector<2x96xf32>
    %115 = tpu.matmul %114, %14, %cst_27 {dimension_numbers = #tpu.dot_dimension_numbers<[1], [0], [0], [1], [0, 0, 1, 1], [], []>} : vector<2x32xf32>, vector<32x96xf32>, vector<2x96xf32> -> vector<2x96xf32>
    %116 = vector.extract_strided_slice %11 {offsets = [0, 3, 0], sizes = [2, 1, 32], strides = [1, 1, 1]} : vector<2x8x32xf32> to vector<2x1x32xf32>
    %117 = vector.shape_cast %116 : vector<2x1x32xf32> to vector<2x32xf32>
    %118 = vector.extract_strided_slice %115 {offsets = [0, 0], sizes = [2, 32], strides = [1, 1]} : vector<2x96xf32> to vector<2x32xf32>
    %119 = arith.addf %117, %118 : vector<2x32xf32>
    %120 = arith.negf %119 : vector<2x32xf32>
    %121 = math.exp %120 : vector<2x32xf32>
    %cst_28 = arith.constant 1.000000e+00 : f32
    %122 = vector.broadcast %cst_28 : f32 to vector<2x32xf32>
    %123 = arith.addf %122, %121 : vector<2x32xf32>
    %124 = arith.divf %122, %123 : vector<2x32xf32>
    %125 = vector.extract_strided_slice %12 {offsets = [0, 3, 0], sizes = [2, 1, 32], strides = [1, 1, 1]} : vector<2x8x32xf32> to vector<2x1x32xf32>
    %126 = vector.shape_cast %125 : vector<2x1x32xf32> to vector<2x32xf32>
    %127 = vector.extract_strided_slice %115 {offsets = [0, 32], sizes = [2, 32], strides = [1, 1]} : vector<2x96xf32> to vector<2x32xf32>
    %128 = arith.addf %126, %127 : vector<2x32xf32>
    %129 = arith.negf %128 : vector<2x32xf32>
    %130 = math.exp %129 : vector<2x32xf32>
    %cst_29 = arith.constant 1.000000e+00 : f32
    %131 = vector.broadcast %cst_29 : f32 to vector<2x32xf32>
    %132 = arith.addf %131, %130 : vector<2x32xf32>
    %133 = arith.divf %131, %132 : vector<2x32xf32>
    %134 = vector.extract_strided_slice %13 {offsets = [0, 3, 0], sizes = [2, 1, 32], strides = [1, 1, 1]} : vector<2x8x32xf32> to vector<2x1x32xf32>
    %135 = vector.shape_cast %134 : vector<2x1x32xf32> to vector<2x32xf32>
    %136 = vector.extract_strided_slice %115 {offsets = [0, 64], sizes = [2, 32], strides = [1, 1]} : vector<2x96xf32> to vector<2x32xf32>
    %137 = vector.broadcast %15 : vector<1x32xf32> to vector<2x32xf32>
    %138 = arith.addf %136, %137 : vector<2x32xf32>
    %139 = arith.mulf %124, %138 : vector<2x32xf32>
    %140 = arith.addf %135, %139 : vector<2x32xf32>
    %141 = math.tanh %140 : vector<2x32xf32>
    %cst_30 = arith.constant 1.000000e+00 : f32
    %142 = vector.broadcast %cst_30 : f32 to vector<2x32xf32>
    %143 = arith.subf %142, %133 : vector<2x32xf32>
    %144 = arith.mulf %143, %141 : vector<2x32xf32>
    %145 = arith.mulf %133, %114 : vector<2x32xf32>
    %146 = arith.addf %144, %145 : vector<2x32xf32>
    %cst_31 = arith.constant dense<0.000000e+00> : vector<2x96xf32>
    %147 = tpu.matmul %146, %14, %cst_31 {dimension_numbers = #tpu.dot_dimension_numbers<[1], [0], [0], [1], [0, 0, 1, 1], [], []>} : vector<2x32xf32>, vector<32x96xf32>, vector<2x96xf32> -> vector<2x96xf32>
    %148 = vector.extract_strided_slice %11 {offsets = [0, 4, 0], sizes = [2, 1, 32], strides = [1, 1, 1]} : vector<2x8x32xf32> to vector<2x1x32xf32>
    %149 = vector.shape_cast %148 : vector<2x1x32xf32> to vector<2x32xf32>
    %150 = vector.extract_strided_slice %147 {offsets = [0, 0], sizes = [2, 32], strides = [1, 1]} : vector<2x96xf32> to vector<2x32xf32>
    %151 = arith.addf %149, %150 : vector<2x32xf32>
    %152 = arith.negf %151 : vector<2x32xf32>
    %153 = math.exp %152 : vector<2x32xf32>
    %cst_32 = arith.constant 1.000000e+00 : f32
    %154 = vector.broadcast %cst_32 : f32 to vector<2x32xf32>
    %155 = arith.addf %154, %153 : vector<2x32xf32>
    %156 = arith.divf %154, %155 : vector<2x32xf32>
    %157 = vector.extract_strided_slice %12 {offsets = [0, 4, 0], sizes = [2, 1, 32], strides = [1, 1, 1]} : vector<2x8x32xf32> to vector<2x1x32xf32>
    %158 = vector.shape_cast %157 : vector<2x1x32xf32> to vector<2x32xf32>
    %159 = vector.extract_strided_slice %147 {offsets = [0, 32], sizes = [2, 32], strides = [1, 1]} : vector<2x96xf32> to vector<2x32xf32>
    %160 = arith.addf %158, %159 : vector<2x32xf32>
    %161 = arith.negf %160 : vector<2x32xf32>
    %162 = math.exp %161 : vector<2x32xf32>
    %cst_33 = arith.constant 1.000000e+00 : f32
    %163 = vector.broadcast %cst_33 : f32 to vector<2x32xf32>
    %164 = arith.addf %163, %162 : vector<2x32xf32>
    %165 = arith.divf %163, %164 : vector<2x32xf32>
    %166 = vector.extract_strided_slice %13 {offsets = [0, 4, 0], sizes = [2, 1, 32], strides = [1, 1, 1]} : vector<2x8x32xf32> to vector<2x1x32xf32>
    %167 = vector.shape_cast %166 : vector<2x1x32xf32> to vector<2x32xf32>
    %168 = vector.extract_strided_slice %147 {offsets = [0, 64], sizes = [2, 32], strides = [1, 1]} : vector<2x96xf32> to vector<2x32xf32>
    %169 = vector.broadcast %15 : vector<1x32xf32> to vector<2x32xf32>
    %170 = arith.addf %168, %169 : vector<2x32xf32>
    %171 = arith.mulf %156, %170 : vector<2x32xf32>
    %172 = arith.addf %167, %171 : vector<2x32xf32>
    %173 = math.tanh %172 : vector<2x32xf32>
    %cst_34 = arith.constant 1.000000e+00 : f32
    %174 = vector.broadcast %cst_34 : f32 to vector<2x32xf32>
    %175 = arith.subf %174, %165 : vector<2x32xf32>
    %176 = arith.mulf %175, %173 : vector<2x32xf32>
    %177 = arith.mulf %165, %146 : vector<2x32xf32>
    %178 = arith.addf %176, %177 : vector<2x32xf32>
    %cst_35 = arith.constant dense<0.000000e+00> : vector<2x96xf32>
    %179 = tpu.matmul %178, %14, %cst_35 {dimension_numbers = #tpu.dot_dimension_numbers<[1], [0], [0], [1], [0, 0, 1, 1], [], []>} : vector<2x32xf32>, vector<32x96xf32>, vector<2x96xf32> -> vector<2x96xf32>
    %180 = vector.extract_strided_slice %11 {offsets = [0, 5, 0], sizes = [2, 1, 32], strides = [1, 1, 1]} : vector<2x8x32xf32> to vector<2x1x32xf32>
    %181 = vector.shape_cast %180 : vector<2x1x32xf32> to vector<2x32xf32>
    %182 = vector.extract_strided_slice %179 {offsets = [0, 0], sizes = [2, 32], strides = [1, 1]} : vector<2x96xf32> to vector<2x32xf32>
    %183 = arith.addf %181, %182 : vector<2x32xf32>
    %184 = arith.negf %183 : vector<2x32xf32>
    %185 = math.exp %184 : vector<2x32xf32>
    %cst_36 = arith.constant 1.000000e+00 : f32
    %186 = vector.broadcast %cst_36 : f32 to vector<2x32xf32>
    %187 = arith.addf %186, %185 : vector<2x32xf32>
    %188 = arith.divf %186, %187 : vector<2x32xf32>
    %189 = vector.extract_strided_slice %12 {offsets = [0, 5, 0], sizes = [2, 1, 32], strides = [1, 1, 1]} : vector<2x8x32xf32> to vector<2x1x32xf32>
    %190 = vector.shape_cast %189 : vector<2x1x32xf32> to vector<2x32xf32>
    %191 = vector.extract_strided_slice %179 {offsets = [0, 32], sizes = [2, 32], strides = [1, 1]} : vector<2x96xf32> to vector<2x32xf32>
    %192 = arith.addf %190, %191 : vector<2x32xf32>
    %193 = arith.negf %192 : vector<2x32xf32>
    %194 = math.exp %193 : vector<2x32xf32>
    %cst_37 = arith.constant 1.000000e+00 : f32
    %195 = vector.broadcast %cst_37 : f32 to vector<2x32xf32>
    %196 = arith.addf %195, %194 : vector<2x32xf32>
    %197 = arith.divf %195, %196 : vector<2x32xf32>
    %198 = vector.extract_strided_slice %13 {offsets = [0, 5, 0], sizes = [2, 1, 32], strides = [1, 1, 1]} : vector<2x8x32xf32> to vector<2x1x32xf32>
    %199 = vector.shape_cast %198 : vector<2x1x32xf32> to vector<2x32xf32>
    %200 = vector.extract_strided_slice %179 {offsets = [0, 64], sizes = [2, 32], strides = [1, 1]} : vector<2x96xf32> to vector<2x32xf32>
    %201 = vector.broadcast %15 : vector<1x32xf32> to vector<2x32xf32>
    %202 = arith.addf %200, %201 : vector<2x32xf32>
    %203 = arith.mulf %188, %202 : vector<2x32xf32>
    %204 = arith.addf %199, %203 : vector<2x32xf32>
    %205 = math.tanh %204 : vector<2x32xf32>
    %cst_38 = arith.constant 1.000000e+00 : f32
    %206 = vector.broadcast %cst_38 : f32 to vector<2x32xf32>
    %207 = arith.subf %206, %197 : vector<2x32xf32>
    %208 = arith.mulf %207, %205 : vector<2x32xf32>
    %209 = arith.mulf %197, %178 : vector<2x32xf32>
    %210 = arith.addf %208, %209 : vector<2x32xf32>
    %cst_39 = arith.constant dense<0.000000e+00> : vector<2x96xf32>
    %211 = tpu.matmul %210, %14, %cst_39 {dimension_numbers = #tpu.dot_dimension_numbers<[1], [0], [0], [1], [0, 0, 1, 1], [], []>} : vector<2x32xf32>, vector<32x96xf32>, vector<2x96xf32> -> vector<2x96xf32>
    %212 = vector.extract_strided_slice %11 {offsets = [0, 6, 0], sizes = [2, 1, 32], strides = [1, 1, 1]} : vector<2x8x32xf32> to vector<2x1x32xf32>
    %213 = vector.shape_cast %212 : vector<2x1x32xf32> to vector<2x32xf32>
    %214 = vector.extract_strided_slice %211 {offsets = [0, 0], sizes = [2, 32], strides = [1, 1]} : vector<2x96xf32> to vector<2x32xf32>
    %215 = arith.addf %213, %214 : vector<2x32xf32>
    %216 = arith.negf %215 : vector<2x32xf32>
    %217 = math.exp %216 : vector<2x32xf32>
    %cst_40 = arith.constant 1.000000e+00 : f32
    %218 = vector.broadcast %cst_40 : f32 to vector<2x32xf32>
    %219 = arith.addf %218, %217 : vector<2x32xf32>
    %220 = arith.divf %218, %219 : vector<2x32xf32>
    %221 = vector.extract_strided_slice %12 {offsets = [0, 6, 0], sizes = [2, 1, 32], strides = [1, 1, 1]} : vector<2x8x32xf32> to vector<2x1x32xf32>
    %222 = vector.shape_cast %221 : vector<2x1x32xf32> to vector<2x32xf32>
    %223 = vector.extract_strided_slice %211 {offsets = [0, 32], sizes = [2, 32], strides = [1, 1]} : vector<2x96xf32> to vector<2x32xf32>
    %224 = arith.addf %222, %223 : vector<2x32xf32>
    %225 = arith.negf %224 : vector<2x32xf32>
    %226 = math.exp %225 : vector<2x32xf32>
    %cst_41 = arith.constant 1.000000e+00 : f32
    %227 = vector.broadcast %cst_41 : f32 to vector<2x32xf32>
    %228 = arith.addf %227, %226 : vector<2x32xf32>
    %229 = arith.divf %227, %228 : vector<2x32xf32>
    %230 = vector.extract_strided_slice %13 {offsets = [0, 6, 0], sizes = [2, 1, 32], strides = [1, 1, 1]} : vector<2x8x32xf32> to vector<2x1x32xf32>
    %231 = vector.shape_cast %230 : vector<2x1x32xf32> to vector<2x32xf32>
    %232 = vector.extract_strided_slice %211 {offsets = [0, 64], sizes = [2, 32], strides = [1, 1]} : vector<2x96xf32> to vector<2x32xf32>
    %233 = vector.broadcast %15 : vector<1x32xf32> to vector<2x32xf32>
    %234 = arith.addf %232, %233 : vector<2x32xf32>
    %235 = arith.mulf %220, %234 : vector<2x32xf32>
    %236 = arith.addf %231, %235 : vector<2x32xf32>
    %237 = math.tanh %236 : vector<2x32xf32>
    %cst_42 = arith.constant 1.000000e+00 : f32
    %238 = vector.broadcast %cst_42 : f32 to vector<2x32xf32>
    %239 = arith.subf %238, %229 : vector<2x32xf32>
    %240 = arith.mulf %239, %237 : vector<2x32xf32>
    %241 = arith.mulf %229, %210 : vector<2x32xf32>
    %242 = arith.addf %240, %241 : vector<2x32xf32>
    %cst_43 = arith.constant dense<0.000000e+00> : vector<2x96xf32>
    %243 = tpu.matmul %242, %14, %cst_43 {dimension_numbers = #tpu.dot_dimension_numbers<[1], [0], [0], [1], [0, 0, 1, 1], [], []>} : vector<2x32xf32>, vector<32x96xf32>, vector<2x96xf32> -> vector<2x96xf32>
    %244 = vector.extract_strided_slice %11 {offsets = [0, 7, 0], sizes = [2, 1, 32], strides = [1, 1, 1]} : vector<2x8x32xf32> to vector<2x1x32xf32>
    %245 = vector.shape_cast %244 : vector<2x1x32xf32> to vector<2x32xf32>
    %246 = vector.extract_strided_slice %243 {offsets = [0, 0], sizes = [2, 32], strides = [1, 1]} : vector<2x96xf32> to vector<2x32xf32>
    %247 = arith.addf %245, %246 : vector<2x32xf32>
    %248 = arith.negf %247 : vector<2x32xf32>
    %249 = math.exp %248 : vector<2x32xf32>
    %cst_44 = arith.constant 1.000000e+00 : f32
    %250 = vector.broadcast %cst_44 : f32 to vector<2x32xf32>
    %251 = arith.addf %250, %249 : vector<2x32xf32>
    %252 = arith.divf %250, %251 : vector<2x32xf32>
    %253 = vector.extract_strided_slice %12 {offsets = [0, 7, 0], sizes = [2, 1, 32], strides = [1, 1, 1]} : vector<2x8x32xf32> to vector<2x1x32xf32>
    %254 = vector.shape_cast %253 : vector<2x1x32xf32> to vector<2x32xf32>
    %255 = vector.extract_strided_slice %243 {offsets = [0, 32], sizes = [2, 32], strides = [1, 1]} : vector<2x96xf32> to vector<2x32xf32>
    %256 = arith.addf %254, %255 : vector<2x32xf32>
    %257 = arith.negf %256 : vector<2x32xf32>
    %258 = math.exp %257 : vector<2x32xf32>
    %cst_45 = arith.constant 1.000000e+00 : f32
    %259 = vector.broadcast %cst_45 : f32 to vector<2x32xf32>
    %260 = arith.addf %259, %258 : vector<2x32xf32>
    %261 = arith.divf %259, %260 : vector<2x32xf32>
    %262 = vector.extract_strided_slice %13 {offsets = [0, 7, 0], sizes = [2, 1, 32], strides = [1, 1, 1]} : vector<2x8x32xf32> to vector<2x1x32xf32>
    %263 = vector.shape_cast %262 : vector<2x1x32xf32> to vector<2x32xf32>
    %264 = vector.extract_strided_slice %243 {offsets = [0, 64], sizes = [2, 32], strides = [1, 1]} : vector<2x96xf32> to vector<2x32xf32>
    %265 = vector.broadcast %15 : vector<1x32xf32> to vector<2x32xf32>
    %266 = arith.addf %264, %265 : vector<2x32xf32>
    %267 = arith.mulf %252, %266 : vector<2x32xf32>
    %268 = arith.addf %263, %267 : vector<2x32xf32>
    %269 = math.tanh %268 : vector<2x32xf32>
    %cst_46 = arith.constant 1.000000e+00 : f32
    %270 = vector.broadcast %cst_46 : f32 to vector<2x32xf32>
    %271 = arith.subf %270, %261 : vector<2x32xf32>
    %272 = arith.mulf %271, %269 : vector<2x32xf32>
    %273 = arith.mulf %261, %242 : vector<2x32xf32>
    %274 = arith.addf %272, %273 : vector<2x32xf32>
    %275 = vector.shape_cast %50 : vector<2x32xf32> to vector<2x1x32xf32>
    %276 = vector.shape_cast %82 : vector<2x32xf32> to vector<2x1x32xf32>
    %277 = vector.shape_cast %114 : vector<2x32xf32> to vector<2x1x32xf32>
    %278 = vector.shape_cast %146 : vector<2x32xf32> to vector<2x1x32xf32>
    %279 = vector.shape_cast %178 : vector<2x32xf32> to vector<2x1x32xf32>
    %280 = vector.shape_cast %210 : vector<2x32xf32> to vector<2x1x32xf32>
    %281 = vector.shape_cast %242 : vector<2x32xf32> to vector<2x1x32xf32>
    %282 = vector.shape_cast %274 : vector<2x32xf32> to vector<2x1x32xf32>
    %283 = tpu.concatenate %275, %276, %277, %278, %279, %280, %281, %282 in 1 : vector<2x1x32xf32>, vector<2x1x32xf32>, vector<2x1x32xf32>, vector<2x1x32xf32>, vector<2x1x32xf32>, vector<2x1x32xf32>, vector<2x1x32xf32>, vector<2x1x32xf32> -> vector<2x8x32xf32>
    %284 = vector.shape_cast %283 : vector<2x8x32xf32> to vector<16x32xf32>
    %c0_47 = arith.constant 0 : index
    %c0_48 = arith.constant 0 : index
    %285 = vector.load %arg7[%c0_47, %c0_48] : memref<32x32xf32, #tpu.memory_space<vmem>>, vector<32x32xf32>
    %c0_49 = arith.constant 0 : index
    %c0_50 = arith.constant 0 : index
    %286 = vector.load %arg8[%c0_49, %c0_50] : memref<1x32xf32, #tpu.memory_space<vmem>>, vector<1x32xf32>
    %cst_51 = arith.constant dense<0.000000e+00> : vector<16x32xf32>
    %287 = tpu.matmul %284, %285, %cst_51 {dimension_numbers = #tpu.dot_dimension_numbers<[1], [0], [0], [1], [0, 0, 1, 1], [], []>} : vector<16x32xf32>, vector<32x32xf32>, vector<16x32xf32> -> vector<16x32xf32>
    %288 = vector.broadcast %286 : vector<1x32xf32> to vector<16x32xf32>
    %289 = arith.addf %287, %288 : vector<16x32xf32>
    %cst_52 = arith.constant 0.000000e+00 : f32
    %290 = vector.broadcast %cst_52 : f32 to vector<16x32xf32>
    %291 = arith.maximumf %289, %290 : vector<16x32xf32>
    %c0_53 = arith.constant 0 : index
    %c0_54 = arith.constant 0 : index
    %292 = vector.load %arg9[%c0_53, %c0_54] : memref<32x128xf32, #tpu.memory_space<vmem>>, vector<32x128xf32>
    %cst_55 = arith.constant dense<0.000000e+00> : vector<16x128xf32>
    %293 = tpu.matmul %291, %292, %cst_55 {dimension_numbers = #tpu.dot_dimension_numbers<[1], [0], [0], [1], [0, 0, 1, 1], [], []>} : vector<16x32xf32>, vector<32x128xf32>, vector<16x128xf32> -> vector<16x128xf32>
    %c0_56 = arith.constant 0 : index
    %c0_57 = arith.constant 0 : index
    %294 = vector.load %arg10[%c0_56, %c0_57] : memref<1x128xf32, #tpu.memory_space<vmem>>, vector<1x128xf32>
    %295 = vector.broadcast %294 : vector<1x128xf32> to vector<16x128xf32>
    %296 = arith.addf %293, %295 : vector<16x128xf32>
    %297 = tpu.iota {dimensions = array<i32: 1>} : vector<16x128xi32>
    %c8_i32 = arith.constant 8 : i32
    %298 = vector.broadcast %c8_i32 : i32 to vector<16x128xi32>
    %299 = arith.cmpi sge, %297, %298 : vector<16x128xi32>
    %c16_i32 = arith.constant 16 : i32
    %300 = vector.broadcast %c16_i32 : i32 to vector<16x128xi32>
    %301 = arith.cmpi slt, %297, %300 : vector<16x128xi32>
    %302 = arith.andi %299, %301 : vector<16x128xi1>
    %cst_58 = arith.constant 2.000000e+01 : f32
    %303 = vector.broadcast %cst_58 : f32 to vector<16x128xf32>
    %304 = arith.cmpf ogt, %296, %303 : vector<16x128xf32>
    %cst_59 = arith.constant 2.000000e+01 : f32
    %305 = vector.broadcast %cst_59 : f32 to vector<16x128xf32>
    %306 = arith.minimumf %296, %305 : vector<16x128xf32>
    %307 = math.exp %306 : vector<16x128xf32>
    %308 = math.log1p %307 : vector<16x128xf32>
    %309 = arith.select %304, %296, %308 : vector<16x128xi1>, vector<16x128xf32>
    %310 = arith.select %302, %309, %296 : vector<16x128xi1>, vector<16x128xf32>
    %c0_60 = arith.constant 0 : index
    %c0_61 = arith.constant 0 : index
    %311 = vector.load %arg11[%c0_60, %c0_61] : memref<16x128xf32, #tpu.memory_space<vmem>>, vector<16x128xf32>
    tpu.vector_store %arg11[%c0_60, %c0_61], %310 {strides = array<i32>} : memref<16x128xf32, #tpu.memory_space<vmem>>, vector<16x128xf32>,
    return
  }
}

</mosaic_0001>

<llo_original>
// kernel: decoder_rnn_forward.1
$region0: #{decoder_rnn_forward.1}
  #allocation0 [shape = 'u32[]', space=smem, size = 0x4, offset = 0x4, fixed_abs, tag = 'smem constant byte address 0x4 - core index']
  #allocation1 [shape = 'u32[144,128]{1,0:T(1,128)}', space=vmem, size = 0x12000, scoped, tag = 'internal scratch']
  %s0 = inlined_call_operand.vmem [shape: f32[2,8,8], index: 0, kind: input, shape index: {}]
  %s1 = inlined_call_operand.vmem [shape: f32[2,8,8], index: 1, kind: input, shape index: {}]
  %s2 = inlined_call_operand.vmem [shape: f32[1,32], index: 2, kind: input, shape index: {}]
  %s3 = inlined_call_operand.vmem [shape: f32[16,96], index: 3, kind: input, shape index: {}]
  %s4 = inlined_call_operand.vmem [shape: f32[1,96], index: 4, kind: input, shape index: {}]
  %s5 = inlined_call_operand.vmem [shape: f32[32,96], index: 5, kind: input, shape index: {}]
  %s6 = inlined_call_operand.vmem [shape: f32[1,32], index: 6, kind: input, shape index: {}]
  %s7 = inlined_call_operand.vmem [shape: f32[32,32], index: 7, kind: input, shape index: {}]
  %s8 = inlined_call_operand.vmem [shape: f32[1,32], index: 8, kind: input, shape index: {}]
  %s9 = inlined_call_operand.vmem [shape: f32[32,128], index: 9, kind: input, shape index: {}]
  %s10 = inlined_call_operand.vmem [shape: f32[1,128], index: 10, kind: input, shape index: {}]
  %s11 = inlined_call_operand.vmem [shape: f32[16,128], index: 11, kind: output, shape index: {}]
  %s12 = sld [smem:[#allocation0]]
  $region54: #{decoder_rnn_forward.1} parent=0
    _
  %s14 = ssub.s32 1, %s12
  %s15 = scalar_select 0, %s14, %s12
  // Predicated region
  $region2: #{decoder_rnn_forward.1} parent=0 // pred_check
    _
  $region3: #{decoder_rnn_forward.1} parent=0 // pred_check_branch
    %17 = sbr.rel (0) target = $region5
  $region4: #{decoder_rnn_forward.1} parent=0 // pred_region
    _
  $region5: #{decoder_rnn_forward.1} parent=0 // pred_fallthru
    _
  // Predicated region
  $region6: #{decoder_rnn_forward.1} parent=0 // pred_check
    _
  $region7: #{decoder_rnn_forward.1} parent=0 // pred_check_branch
    %19 = sbr.rel (0) target = $region9
  $region8: #{decoder_rnn_forward.1} parent=0 // pred_region
    _
  $region9: #{decoder_rnn_forward.1} parent=0 // pred_fallthru
    _
  // Predicated region
  $region10: #{decoder_rnn_forward.1} parent=0 // pred_check
    _
  $region11: #{decoder_rnn_forward.1} parent=0 // pred_check_branch
    %21 = sbr.rel (0) target = $region13
  $region12: #{decoder_rnn_forward.1} parent=0 // pred_region
    _
  $region13: #{decoder_rnn_forward.1} parent=0 // pred_fallthru
    _
  // Predicated region
  $region14: #{decoder_rnn_forward.1} parent=0 // pred_check
    _
  $region15: #{decoder_rnn_forward.1} parent=0 // pred_check_branch
    %23 = sbr.rel (0) target = $region17
  $region16: #{decoder_rnn_forward.1} parent=0 // pred_region
    _
  $region17: #{decoder_rnn_forward.1} parent=0 // pred_fallthru
    _
  // Predicated region
  $region18: #{decoder_rnn_forward.1} parent=0 // pred_check
    _
  $region19: #{decoder_rnn_forward.1} parent=0 // pred_check_branch
    %25 = sbr.rel (0) target = $region21
  $region20: #{decoder_rnn_forward.1} parent=0 // pred_region
    _
  $region21: #{decoder_rnn_forward.1} parent=0 // pred_fallthru
    _
  // Predicated region
  $region22: #{decoder_rnn_forward.1} parent=0 // pred_check
    _
  $region23: #{decoder_rnn_forward.1} parent=0 // pred_check_branch
    %27 = sbr.rel (0) target = $region25
  $region24: #{decoder_rnn_forward.1} parent=0 // pred_region
    _
  $region25: #{decoder_rnn_forward.1} parent=0 // pred_fallthru
    _
  // Predicated region
  $region26: #{decoder_rnn_forward.1} parent=0 // pred_check
    _
  $region27: #{decoder_rnn_forward.1} parent=0 // pred_check_branch
    %29 = sbr.rel (0) target = $region29
  $region28: #{decoder_rnn_forward.1} parent=0 // pred_region
    _
  $region29: #{decoder_rnn_forward.1} parent=0 // pred_fallthru
    _
  // Predicated region
  $region30: #{decoder_rnn_forward.1} parent=0 // pred_check
    _
  $region31: #{decoder_rnn_forward.1} parent=0 // pred_check_branch
    %31 = sbr.rel (0) target = $region33
  $region32: #{decoder_rnn_forward.1} parent=0 // pred_region
    _
  $region33: #{decoder_rnn_forward.1} parent=0 // pred_fallthru
    _
  // Predicated region
  $region34: #{decoder_rnn_forward.1} parent=0 // pred_check
    _
  $region35: #{decoder_rnn_forward.1} parent=0 // pred_check_branch
    %33 = sbr.rel (0) target = $region37
  $region36: #{decoder_rnn_forward.1} parent=0 // pred_region
    _
  $region37: #{decoder_rnn_forward.1} parent=0 // pred_fallthru
    _
  // Predicated region
  $region38: #{decoder_rnn_forward.1} parent=0 // pred_check
    _
  $region39: #{decoder_rnn_forward.1} parent=0 // pred_check_branch
    %35 = sbr.rel (0) target = $region41
  $region40: #{decoder_rnn_forward.1} parent=0 // pred_region
    _
  $region41: #{decoder_rnn_forward.1} parent=0 // pred_fallthru
    _
  // Predicated region
  $region42: #{decoder_rnn_forward.1} parent=0 // pred_check
    _
  $region43: #{decoder_rnn_forward.1} parent=0 // pred_check_branch
    %37 = sbr.rel (0) target = $region45
  $region44: #{decoder_rnn_forward.1} parent=0 // pred_region
    _
  $region45: #{decoder_rnn_forward.1} parent=0 // pred_fallthru
    _
  %v38 = vld [vmem:[%s0] sm:$0xff]
  %v39 = vld [vmem:[%s0 + $0x8] sm:$0xff]
  %v40 = vld [vmem:[%s1] sm:$0xff]
  %v41 = vld [vmem:[%s1 + $0x8] sm:$0xff]
  %44 = vrot.lane.b32.xlu0 %v40, 8
  %v45 = vpop.permute.xlu0 %44
  %46 = vrot.lane.b32.xlu0 %v41, 8
  %v47 = vpop.permute.xlu0 %46
  %vm50 = vcmask 64512
  %v51 = vsel %vm50, %v38, %v45
  %v52 = vsel %vm50, %v39, %v47
  %v53 = vld [vmem:[%s3] sm:$0xff]
  %v54 = vld [vmem:[%s3 + $0x8] sm:$0xff]
  %v55 = vld [vmem:[%s4] sm:$0x1]
  %v57 = vlaneseq
  %v58 = vshrl.u32 %v57, 7
  %v59 = vsub.s32 0, %v58
  %v60 = vrot.slane %v55, %v59
  %vm62 = vcmask 130048
  %v64 = vsel %vm62, %v51, 0
  %v67 = vsel %vm62, %v52, 0
  %69 = vmatprep.subr.mxu0 0.0
  %70 = vmatpush1.msra.mxu0 %v53
  %71 = vmatprep.subr.mxu0 0.0
  %72 = vmatpush1.msra.mxu0 %v54
  %73 = vmatprep.subr.mxu0 0.0
  %74 = vmatpush1.msra.mxu0 0.0
  %75 = vmatprep.subr.mxu0 0.0
  %76 = vmatpush1.msra.mxu0 0.0
  %77 = vmatprep.subr.mxu0 0.0
  %78 = vmatpush1.msra.mxu0 0.0
  %79 = vmatprep.subr.mxu0 0.0
  %80 = vmatpush1.msra.mxu0 0.0
  %81 = vmatprep.subr.mxu0 0.0
  %82 = vmatpush1.msra.mxu0 0.0
  %83 = vmatprep.subr.mxu0 0.0
  %84 = vmatpush1.msra.mxu0 0.0
  %85 = vmatprep.subr.mxu0 0.0
  %86 = vmatpush1.msra.mxu0 0.0
  %87 = vmatprep.subr.mxu0 0.0
  %88 = vmatpush1.msra.mxu0 0.0
  %89 = vmatprep.subr.mxu0 0.0
  %90 = vmatpush1.msra.mxu0 0.0
  %91 = vmatprep.subr.mxu0 0.0
  %92 = vmatpush1.msra.mxu0 0.0
  %93 = vmatprep.subr.mxu0 0.0
  %94 = vmatpush1.msra.mxu0 0.0
  %95 = vmatprep.subr.mxu0 0.0
  %96 = vmatpush1.msra.mxu0 0.0
  %97 = vmatprep.subr.mxu0 0.0
  %98 = vmatpush1.msra.mxu0 0.0
  %99 = vmatprep.subr.mxu0 0.0
  %100 = vmatpush1.msra.mxu0 0.0
  %101 = vmatprep.subr.mxu0 0.0
  %102 = vmatpush1.msra.mxu0 0.0
  %103 = vmatprep.subr.mxu0 0.0
  %104 = vmatpush1.msra.mxu0 0.0
  %105 = vmatprep.subr.mxu0 0.0
  %106 = vmatpush1.msra.mxu0 0.0
  %107 = vmatprep.subr.mxu0 0.0
  %108 = vmatpush1.msra.mxu0 0.0
  %109 = vmatprep.subr.mxu0 0.0
  %110 = vmatpush1.msra.mxu0 0.0
  %111 = vmatprep.subr.mxu0 0.0
  %112 = vmatpush1.msra.mxu0 0.0
  %113 = vmatprep.subr.mxu0 0.0
  %114 = vmatpush1.msra.mxu0 0.0
  %115 = vmatprep.subr.mxu0 0.0
  %116 = vmatpush1.msra.mxu0 0.0
  %117 = vmatprep.subr.mxu0 0.0
  %118 = vmatpush1.msra.mxu0 0.0
  %119 = vmatprep.subr.mxu0 0.0
  %120 = vmatpush1.msra.mxu0 0.0
  %121 = vmatprep.subr.mxu0 0.0
  %122 = vmatpush1.msra.mxu0 0.0
  %123 = vmatprep.subr.mxu0 0.0
  %124 = vmatpush1.msra.mxu0 0.0
  %125 = vmatprep.subr.mxu0 0.0
  %126 = vmatpush1.msra.mxu0 0.0
  %127 = vmatprep.subr.mxu0 0.0
  %128 = vmatpush1.msra.mxu0 0.0
  %129 = vmatprep.subr.mxu0 0.0
  %130 = vmatpush1.msra.mxu0 0.0
  %131 = vmatprep.subr.mxu0 0.0
  %132 = vmatpush1.msra.mxu0 0.0
  %133 = vmatprep.mubr.f32.mxu0 0.0
  %134 = vmatmul.mubr.f32.gmra.mrb[0].mxu0 %v64
  %v135 = vpop.f32.mrb[0].mxu0
  %v136 = vadd.f32 %v60, %v135
  %v137 = vpop.f32.mrb[0].mxu0
  %138 = vmatprep.mubr.f32.mxu0 0.0
  %139 = vmatmul.mubr.f32.gmra.mrb[0].mxu0 %v67
  %v140 = vpop.f32.mrb[0].mxu0
  %v141 = vadd.f32 %v60, %v140
  %v142 = vpop.f32.mrb[0].mxu0
  %143 = vdwg.mxu0
  %v144 = vld [vmem:[%s5] sm:$0xff]
  %v145 = vld [vmem:[%s5 + $0x8] sm:$0xff]
  %v146 = vld [vmem:[%s5 + $0x10] sm:$0xff]
  %v147 = vld [vmem:[%s5 + $0x18] sm:$0xff]
  %v148 = vld [vmem:[%s6] sm:$0x1]
  %v149 = vld [vmem:[%s2] sm:$0x1]
  %v151 = vlaneseq
  %v152 = vshrl.u32 %v151, 7
  %v153 = vsub.s32 0, %v152
  %v154 = vrot.slane %v149, %v153
  %vm155 = vcmask 261120
  %v156 = vsel %vm155, %v154, 0
  %158 = vmatprep.subr.mxu0 0.0
  %159 = vmatpush1.msra.mxu0 %v144
  %160 = vmatprep.subr.mxu0 0.0
  %161 = vmatpush1.msra.mxu0 %v145
  %162 = vmatprep.subr.mxu0 0.0
  %163 = vmatpush1.msra.mxu0 %v146
  %164 = vmatprep.subr.mxu0 0.0
  %165 = vmatpush1.msra.mxu0 %v147
  %166 = vmatprep.subr.mxu0 0.0
  %167 = vmatpush1.msra.mxu0 0.0
  %168 = vmatprep.subr.mxu0 0.0
  %169 = vmatpush1.msra.mxu0 0.0
  %170 = vmatprep.subr.mxu0 0.0
  %171 = vmatpush1.msra.mxu0 0.0
  %172 = vmatprep.subr.mxu0 0.0
  %173 = vmatpush1.msra.mxu0 0.0
  %174 = vmatprep.subr.mxu0 0.0
  %175 = vmatpush1.msra.mxu0 0.0
  %176 = vmatprep.subr.mxu0 0.0
  %177 = vmatpush1.msra.mxu0 0.0
  %178 = vmatprep.subr.mxu0 0.0
  %179 = vmatpush1.msra.mxu0 0.0
  %180 = vmatprep.subr.mxu0 0.0
  %181 = vmatpush1.msra.mxu0 0.0
  %182 = vmatprep.subr.mxu0 0.0
  %183 = vmatpush1.msra.mxu0 0.0
  %184 = vmatprep.subr.mxu0 0.0
  %185 = vmatpush1.msra.mxu0 0.0
  %186 = vmatprep.subr.mxu0 0.0
  %187 = vmatpush1.msra.mxu0 0.0
  %188 = vmatprep.subr.mxu0 0.0
  %189 = vmatpush1.msra.mxu0 0.0
  %190 = vmatprep.subr.mxu0 0.0
  %191 = vmatpush1.msra.mxu0 0.0
  %192 = vmatprep.subr.mxu0 0.0
  %193 = vmatpush1.msra.mxu0 0.0
  %194 = vmatprep.subr.mxu0 0.0
  %195 = vmatpush1.msra.mxu0 0.0
  %196 = vmatprep.subr.mxu0 0.0
  %197 = vmatpush1.msra.mxu0 0.0
  %198 = vmatprep.subr.mxu0 0.0
  %199 = vmatpush1.msra.mxu0 0.0
  %200 = vmatprep.subr.mxu0 0.0
  %201 = vmatpush1.msra.mxu0 0.0
  %202 = vmatprep.subr.mxu0 0.0
  %203 = vmatpush1.msra.mxu0 0.0
  %204 = vmatprep.subr.mxu0 0.0
  %205 = vmatpush1.msra.mxu0 0.0
  %206 = vmatprep.subr.mxu0 0.0
  %207 = vmatpush1.msra.mxu0 0.0
  %208 = vmatprep.subr.mxu0 0.0
  %209 = vmatpush1.msra.mxu0 0.0
  %210 = vmatprep.subr.mxu0 0.0
  %211 = vmatpush1.msra.mxu0 0.0
  %212 = vmatprep.subr.mxu0 0.0
  %213 = vmatpush1.msra.mxu0 0.0
  %214 = vmatprep.subr.mxu0 0.0
  %215 = vmatpush1.msra.mxu0 0.0
  %216 = vmatprep.subr.mxu0 0.0
  %217 = vmatpush1.msra.mxu0 0.0
  %218 = vmatprep.subr.mxu0 0.0
  %219 = vmatpush1.msra.mxu0 0.0
  %220 = vmatprep.subr.mxu0 0.0
  %221 = vmatpush1.msra.mxu0 0.0
  %222 = vmatprep.mubr.f32.mxu0 0.0
  %223 = vmatmul.mubr.f32.gmra.mrb[0].mxu0 %v156
  %v224 = vpop.f32.mrb[0].mxu0
  %v225 = vadd.f32 0.0, %v224
  %v226 = vpop.f32.mrb[0].mxu0
  %227 = vdwg.mxu0
  %v229 = vrot.slane %v225, 1
  %v232 = vadd.f32 %v136, %v225
  %v233 = vadd.f32 %v141, %v229
  %v234 = vxor.u32 %v232, 2147483648
  %v235 = vxor.u32 %v233, 2147483648
  %v236 = vmul.f32 %v234, 1.442695
  %v237 = vpow.pop %v236
  %v238 = vmul.f32 %v235, 1.442695
  %v239 = vpow.pop %v238
  %v240 = vadd.f32 %v237, 1.0
  %v241 = vadd.f32 %v239, 1.0
  %v242 = vrcp.pop %v240
  %v243 = vmul.f32 1.0, %v242
  %v244 = vrcp.pop %v241
  %v245 = vmul.f32 1.0, %v244
  %v247 = vlaneseq
  %v248 = vshrl.u32 %v247, 7
  %v249 = vsub.s32 0, %v248
  %v250 = vrot.slane %v148, %v249
  %251 = vrot.lane.b32.xlu0 %v250, 64
  %v252 = vpop.permute.xlu0 %251
  %v254 = vadd.f32 %v225, %v252
  %v256 = vrot.slane %v254, 1
  %257 = vrot.lane.b32.xlu0 %v254, 64
  %v258 = vpop.permute.xlu0 %257
  %259 = vrot.lane.b32.xlu0 %v256, 64
  %v260 = vpop.permute.xlu0 %259
  %v263 = vmul.f32 %v243, %v258
  %v264 = vmul.f32 %v245, %v260
  %267 = vrot.lane.b32.xlu0 %v263, 64
  %v268 = vpop.permute.xlu0 %267
  %269 = vrot.lane.b32.xlu0 %v264, 64
  %v270 = vpop.permute.xlu0 %269
  %v273 = vadd.f32 %v136, %v268
  %v274 = vadd.f32 %v141, %v270
  %v275 = vtanh.pop %v273
  %v276 = vtanh.pop %v274
  %v277 = vsub.f32 1.0, %v243
  %v278 = vsub.f32 1.0, %v245
  %281 = vrot.lane.b32.xlu0 %v275, 96
  %v282 = vpop.permute.xlu0 %281
  %283 = vrot.lane.b32.xlu0 %v276, 96
  %v284 = vpop.permute.xlu0 %283
  %v287 = vmul.f32 %v277, %v282
  %v288 = vmul.f32 %v278, %v284
  %289 = vrot.lane.b32.xlu0 %v154, 32
  %v290 = vpop.permute.xlu0 %289
  %v292 = vmul.f32 %v243, %v290
  %v293 = vmul.f32 %v245, %v290
  %v294 = vadd.f32 %v287, %v292
  %v295 = vadd.f32 %v288, %v293
  %v298 = vrot.slane %v295, 7
  %vm299 = vcmask 1041409
  %v300 = vsel %vm299, %v298, %v294
  %301 = vrot.lane.b32.xlu0 %v300, 96
  %v302 = vpop.permute.xlu0 %301
  %v303 = vsel %vm155, %v302, 0
  %305 = vmatprep.subr.mxu0 0.0
  %306 = vmatpush1.msra.mxu0 %v144
  %307 = vmatprep.subr.mxu0 0.0
  %308 = vmatpush1.msra.mxu0 %v145
  %309 = vmatprep.subr.mxu0 0.0
  %310 = vmatpush1.msra.mxu0 %v146
  %311 = vmatprep.subr.mxu0 0.0
  %312 = vmatpush1.msra.mxu0 %v147
  %313 = vmatprep.subr.mxu0 0.0
  %314 = vmatpush1.msra.mxu0 0.0
  %315 = vmatprep.subr.mxu0 0.0
  %316 = vmatpush1.msra.mxu0 0.0
  %317 = vmatprep.subr.mxu0 0.0
  %318 = vmatpush1.msra.mxu0 0.0
  %319 = vmatprep.subr.mxu0 0.0
  %320 = vmatpush1.msra.mxu0 0.0
  %321 = vmatprep.subr.mxu0 0.0
  %322 = vmatpush1.msra.mxu0 0.0
  %323 = vmatprep.subr.mxu0 0.0
  %324 = vmatpush1.msra.mxu0 0.0
  %325 = vmatprep.subr.mxu0 0.0
  %326 = vmatpush1.msra.mxu0 0.0
  %327 = vmatprep.subr.mxu0 0.0
  %328 = vmatpush1.msra.mxu0 0.0
  %329 = vmatprep.subr.mxu0 0.0
  %330 = vmatpush1.msra.mxu0 0.0
  %331 = vmatprep.subr.mxu0 0.0
  %332 = vmatpush1.msra.mxu0 0.0
  %333 = vmatprep.subr.mxu0 0.0
  %334 = vmatpush1.msra.mxu0 0.0
  %335 = vmatprep.subr.mxu0 0.0
  %336 = vmatpush1.msra.mxu0 0.0
  %337 = vmatprep.subr.mxu0 0.0
  %338 = vmatpush1.msra.mxu0 0.0
  %339 = vmatprep.subr.mxu0 0.0
  %340 = vmatpush1.msra.mxu0 0.0
  %341 = vmatprep.subr.mxu0 0.0
  %342 = vmatpush1.msra.mxu0 0.0
  %343 = vmatprep.subr.mxu0 0.0
  %344 = vmatpush1.msra.mxu0 0.0
  %345 = vmatprep.subr.mxu0 0.0
  %346 = vmatpush1.msra.mxu0 0.0
  %347 = vmatprep.subr.mxu0 0.0
  %348 = vmatpush1.msra.mxu0 0.0
  %349 = vmatprep.subr.mxu0 0.0
  %350 = vmatpush1.msra.mxu0 0.0
  %351 = vmatprep.subr.mxu0 0.0
  %352 = vmatpush1.msra.mxu0 0.0
  %353 = vmatprep.subr.mxu0 0.0
  %354 = vmatpush1.msra.mxu0 0.0
  %355 = vmatprep.subr.mxu0 0.0
  %356 = vmatpush1.msra.mxu0 0.0
  %357 = vmatprep.subr.mxu0 0.0
  %358 = vmatpush1.msra.mxu0 0.0
  %359 = vmatprep.subr.mxu0 0.0
  %360 = vmatpush1.msra.mxu0 0.0
  %361 = vmatprep.subr.mxu0 0.0
  %362 = vmatpush1.msra.mxu0 0.0
  %363 = vmatprep.subr.mxu0 0.0
  %364 = vmatpush1.msra.mxu0 0.0
  %365 = vmatprep.subr.mxu0 0.0
  %366 = vmatpush1.msra.mxu0 0.0
  %367 = vmatprep.subr.mxu0 0.0
  %368 = vmatpush1.msra.mxu0 0.0
  %369 = vmatprep.mubr.f32.mxu0 0.0
  %370 = vmatmul.mubr.f32.gmra.mrb[0].mxu0 %v303
  %v371 = vpop.f32.mrb[0].mxu0
  %v372 = vadd.f32 0.0, %v371
  %v373 = vpop.f32.mrb[0].mxu0
  %374 = vdwg.mxu0
  %v376 = vrot.slane %v372, 7
  %v379 = vadd.f32 %v136, %v376
  %v380 = vadd.f32 %v141, %v372
  %v381 = vxor.u32 %v379, 2147483648
  %v382 = vxor.u32 %v380, 2147483648
  %v383 = vmul.f32 %v381, 1.442695
  %v384 = vpow.pop %v383
  %v385 = vmul.f32 %v382, 1.442695
  %v386 = vpow.pop %v385
  %v387 = vadd.f32 %v384, 1.0
  %v388 = vadd.f32 %v386, 1.0
  %v389 = vrcp.pop %v387
  %v390 = vmul.f32 1.0, %v389
  %v391 = vrcp.pop %v388
  %v392 = vmul.f32 1.0, %v391
  %v393 = vadd.f32 %v372, %v252
  %v395 = vrot.slane %v393, 7
  %396 = vrot.lane.b32.xlu0 %v395, 64
  %v397 = vpop.permute.xlu0 %396
  %398 = vrot.lane.b32.xlu0 %v393, 64
  %v399 = vpop.permute.xlu0 %398
  %v402 = vmul.f32 %v390, %v397
  %v403 = vmul.f32 %v392, %v399
  %406 = vrot.lane.b32.xlu0 %v402, 64
  %v407 = vpop.permute.xlu0 %406
  %408 = vrot.lane.b32.xlu0 %v403, 64
  %v409 = vpop.permute.xlu0 %408
  %v412 = vadd.f32 %v136, %v407
  %v413 = vadd.f32 %v141, %v409
  %v414 = vtanh.pop %v412
  %v415 = vtanh.pop %v413
  %v416 = vsub.f32 1.0, %v390
  %v417 = vsub.f32 1.0, %v392
  %420 = vrot.lane.b32.xlu0 %v414, 96
  %v421 = vpop.permute.xlu0 %420
  %422 = vrot.lane.b32.xlu0 %v415, 96
  %v423 = vpop.permute.xlu0 %422
  %v426 = vmul.f32 %v416, %v421
  %v427 = vmul.f32 %v417, %v423
  %v428 = vrot.slane %v294, 7
  %v431 = vmul.f32 %v390, %v428
  %v432 = vmul.f32 %v392, %v298
  %v433 = vadd.f32 %v426, %v431
  %v434 = vadd.f32 %v427, %v432
  %v437 = vrot.slane %v433, 1
  %v438 = vsel %vm299, %v434, %v437
  %439 = vrot.lane.b32.xlu0 %v438, 96
  %v440 = vpop.permute.xlu0 %439
  %v441 = vsel %vm155, %v440, 0
  %443 = vmatprep.subr.mxu0 0.0
  %444 = vmatpush1.msra.mxu0 %v144
  %445 = vmatprep.subr.mxu0 0.0
  %446 = vmatpush1.msra.mxu0 %v145
  %447 = vmatprep.subr.mxu0 0.0
  %448 = vmatpush1.msra.mxu0 %v146
  %449 = vmatprep.subr.mxu0 0.0
  %450 = vmatpush1.msra.mxu0 %v147
  %451 = vmatprep.subr.mxu0 0.0
  %452 = vmatpush1.msra.mxu0 0.0
  %453 = vmatprep.subr.mxu0 0.0
  %454 = vmatpush1.msra.mxu0 0.0
  %455 = vmatprep.subr.mxu0 0.0
  %456 = vmatpush1.msra.mxu0 0.0
  %457 = vmatprep.subr.mxu0 0.0
  %458 = vmatpush1.msra.mxu0 0.0
  %459 = vmatprep.subr.mxu0 0.0
  %460 = vmatpush1.msra.mxu0 0.0
  %461 = vmatprep.subr.mxu0 0.0
  %462 = vmatpush1.msra.mxu0 0.0
  %463 = vmatprep.subr.mxu0 0.0
  %464 = vmatpush1.msra.mxu0 0.0
  %465 = vmatprep.subr.mxu0 0.0
  %466 = vmatpush1.msra.mxu0 0.0
  %467 = vmatprep.subr.mxu0 0.0
  %468 = vmatpush1.msra.mxu0 0.0
  %469 = vmatprep.subr.mxu0 0.0
  %470 = vmatpush1.msra.mxu0 0.0
  %471 = vmatprep.subr.mxu0 0.0
  %472 = vmatpush1.msra.mxu0 0.0
  %473 = vmatprep.subr.mxu0 0.0
  %474 = vmatpush1.msra.mxu0 0.0
  %475 = vmatprep.subr.mxu0 0.0
  %476 = vmatpush1.msra.mxu0 0.0
  %477 = vmatprep.subr.mxu0 0.0
  %478 = vmatpush1.msra.mxu0 0.0
  %479 = vmatprep.subr.mxu0 0.0
  %480 = vmatpush1.msra.mxu0 0.0
  %481 = vmatprep.subr.mxu0 0.0
  %482 = vmatpush1.msra.mxu0 0.0
  %483 = vmatprep.subr.mxu0 0.0
  %484 = vmatpush1.msra.mxu0 0.0
  %485 = vmatprep.subr.mxu0 0.0
  %486 = vmatpush1.msra.mxu0 0.0
  %487 = vmatprep.subr.mxu0 0.0
  %488 = vmatpush1.msra.mxu0 0.0
  %489 = vmatprep.subr.mxu0 0.0
  %490 = vmatpush1.msra.mxu0 0.0
  %491 = vmatprep.subr.mxu0 0.0
  %492 = vmatpush1.msra.mxu0 0.0
  %493 = vmatprep.subr.mxu0 0.0
  %494 = vmatpush1.msra.mxu0 0.0
  %495 = vmatprep.subr.mxu0 0.0
  %496 = vmatpush1.msra.mxu0 0.0
  %497 = vmatprep.subr.mxu0 0.0
  %498 = vmatpush1.msra.mxu0 0.0
  %499 = vmatprep.subr.mxu0 0.0
  %500 = vmatpush1.msra.mxu0 0.0
  %501 = vmatprep.subr.mxu0 0.0
  %502 = vmatpush1.msra.mxu0 0.0
  %503 = vmatprep.subr.mxu0 0.0
  %504 = vmatpush1.msra.mxu0 0.0
  %505 = vmatprep.subr.mxu0 0.0
  %506 = vmatpush1.msra.mxu0 0.0
  %507 = vmatprep.mubr.f32.mxu0 0.0
  %508 = vmatmul.mubr.f32.gmra.mrb[0].mxu0 %v441
  %v509 = vpop.f32.mrb[0].mxu0
  %v510 = vadd.f32 0.0, %v509
  %v511 = vpop.f32.mrb[0].mxu0
  %512 = vdwg.mxu0
  %v514 = vrot.slane %v510, 6
  %v515 = vrot.slane %v510, 7
  %v518 = vadd.f32 %v136, %v514
  %v519 = vadd.f32 %v141, %v515
  %v520 = vxor.u32 %v518, 2147483648
  %v521 = vxor.u32 %v519, 2147483648
  %v522 = vmul.f32 %v520, 1.442695
  %v523 = vpow.pop %v522
  %v524 = vmul.f32 %v521, 1.442695
  %v525 = vpow.pop %v524
  %v526 = vadd.f32 %v523, 1.0
  %v527 = vadd.f32 %v525, 1.0
  %v528 = vrcp.pop %v526
  %v529 = vmul.f32 1.0, %v528
  %v530 = vrcp.pop %v527
  %v531 = vmul.f32 1.0, %v530
  %v532 = vadd.f32 %v510, %v252
  %v534 = vrot.slane %v532, 6
  %v535 = vrot.slane %v532, 7
  %536 = vrot.lane.b32.xlu0 %v534, 64
  %v537 = vpop.permute.xlu0 %536
  %538 = vrot.lane.b32.xlu0 %v535, 64
  %v539 = vpop.permute.xlu0 %538
  %v542 = vmul.f32 %v529, %v537
  %v543 = vmul.f32 %v531, %v539
  %546 = vrot.lane.b32.xlu0 %v542, 64
  %v547 = vpop.permute.xlu0 %546
  %548 = vrot.lane.b32.xlu0 %v543, 64
  %v549 = vpop.permute.xlu0 %548
  %v552 = vadd.f32 %v136, %v547
  %v553 = vadd.f32 %v141, %v549
  %v554 = vtanh.pop %v552
  %v555 = vtanh.pop %v553
  %v556 = vsub.f32 1.0, %v529
  %v557 = vsub.f32 1.0, %v531
  %560 = vrot.lane.b32.xlu0 %v554, 96
  %v561 = vpop.permute.xlu0 %560
  %562 = vrot.lane.b32.xlu0 %v555, 96
  %v563 = vpop.permute.xlu0 %562
  %v566 = vmul.f32 %v556, %v561
  %v567 = vmul.f32 %v557, %v563
  %v568 = vrot.slane %v433, 7
  %v569 = vrot.slane %v434, 7
  %v572 = vmul.f32 %v529, %v568
  %v573 = vmul.f32 %v531, %v569
  %v574 = vadd.f32 %v566, %v572
  %v575 = vadd.f32 %v567, %v573
  %v578 = vrot.slane %v574, 2
  %v579 = vrot.slane %v575, 1
  %v580 = vsel %vm299, %v579, %v578
  %581 = vrot.lane.b32.xlu0 %v580, 96
  %v582 = vpop.permute.xlu0 %581
  %v583 = vsel %vm155, %v582, 0
  %585 = vmatprep.subr.mxu0 0.0
  %586 = vmatpush1.msra.mxu0 %v144
  %587 = vmatprep.subr.mxu0 0.0
  %588 = vmatpush1.msra.mxu0 %v145
  %589 = vmatprep.subr.mxu0 0.0
  %590 = vmatpush1.msra.mxu0 %v146
  %591 = vmatprep.subr.mxu0 0.0
  %592 = vmatpush1.msra.mxu0 %v147
  %593 = vmatprep.subr.mxu0 0.0
  %594 = vmatpush1.msra.mxu0 0.0
  %595 = vmatprep.subr.mxu0 0.0
  %596 = vmatpush1.msra.mxu0 0.0
  %597 = vmatprep.subr.mxu0 0.0
  %598 = vmatpush1.msra.mxu0 0.0
  %599 = vmatprep.subr.mxu0 0.0
  %600 = vmatpush1.msra.mxu0 0.0
  %601 = vmatprep.subr.mxu0 0.0
  %602 = vmatpush1.msra.mxu0 0.0
  %603 = vmatprep.subr.mxu0 0.0
  %604 = vmatpush1.msra.mxu0 0.0
  %605 = vmatprep.subr.mxu0 0.0
  %606 = vmatpush1.msra.mxu0 0.0
  %607 = vmatprep.subr.mxu0 0.0
  %608 = vmatpush1.msra.mxu0 0.0
  %609 = vmatprep.subr.mxu0 0.0
  %610 = vmatpush1.msra.mxu0 0.0
  %611 = vmatprep.subr.mxu0 0.0
  %612 = vmatpush1.msra.mxu0 0.0
  %613 = vmatprep.subr.mxu0 0.0
  %614 = vmatpush1.msra.mxu0 0.0
  %615 = vmatprep.subr.mxu0 0.0
  %616 = vmatpush1.msra.mxu0 0.0
  %617 = vmatprep.subr.mxu0 0.0
  %618 = vmatpush1.msra.mxu0 0.0
  %619 = vmatprep.subr.mxu0 0.0
  %620 = vmatpush1.msra.mxu0 0.0
  %621 = vmatprep.subr.mxu0 0.0
  %622 = vmatpush1.msra.mxu0 0.0
  %623 = vmatprep.subr.mxu0 0.0
  %624 = vmatpush1.msra.mxu0 0.0
  %625 = vmatprep.subr.mxu0 0.0
  %626 = vmatpush1.msra.mxu0 0.0
  %627 = vmatprep.subr.mxu0 0.0
  %628 = vmatpush1.msra.mxu0 0.0
  %629 = vmatprep.subr.mxu0 0.0
  %630 = vmatpush1.msra.mxu0 0.0
  %631 = vmatprep.subr.mxu0 0.0
  %632 = vmatpush1.msra.mxu0 0.0
  %633 = vmatprep.subr.mxu0 0.0
  %634 = vmatpush1.msra.mxu0 0.0
  %635 = vmatprep.subr.mxu0 0.0
  %636 = vmatpush1.msra.mxu0 0.0
  %637 = vmatprep.subr.mxu0 0.0
  %638 = vmatpush1.msra.mxu0 0.0
  %639 = vmatprep.subr.mxu0 0.0
  %640 = vmatpush1.msra.mxu0 0.0
  %641 = vmatprep.subr.mxu0 0.0
  %642 = vmatpush1.msra.mxu0 0.0
  %643 = vmatprep.subr.mxu0 0.0
  %644 = vmatpush1.msra.mxu0 0.0
  %645 = vmatprep.subr.mxu0 0.0
  %646 = vmatpush1.msra.mxu0 0.0
  %647 = vmatprep.subr.mxu0 0.0
  %648 = vmatpush1.msra.mxu0 0.0
  %649 = vmatprep.mubr.f32.mxu0 0.0
  %650 = vmatmul.mubr.f32.gmra.mrb[0].mxu0 %v583
  %v651 = vpop.f32.mrb[0].mxu0
  %v652 = vadd.f32 0.0, %v651
  %v653 = vpop.f32.mrb[0].mxu0
  %654 = vdwg.mxu0
  %v656 = vrot.slane %v652, 5
  %v657 = vrot.slane %v652, 6
  %v660 = vadd.f32 %v136, %v656
  %v661 = vadd.f32 %v141, %v657
  %v662 = vxor.u32 %v660, 2147483648
  %v663 = vxor.u32 %v661, 2147483648
  %v664 = vmul.f32 %v662, 1.442695
  %v665 = vpow.pop %v664
  %v666 = vmul.f32 %v663, 1.442695
  %v667 = vpow.pop %v666
  %v668 = vadd.f32 %v665, 1.0
  %v669 = vadd.f32 %v667, 1.0
  %v670 = vrcp.pop %v668
  %v671 = vmul.f32 1.0, %v670
  %v672 = vrcp.pop %v669
  %v673 = vmul.f32 1.0, %v672
  %v674 = vadd.f32 %v652, %v252
  %v676 = vrot.slane %v674, 5
  %v677 = vrot.slane %v674, 6
  %678 = vrot.lane.b32.xlu0 %v676, 64
  %v679 = vpop.permute.xlu0 %678
  %680 = vrot.lane.b32.xlu0 %v677, 64
  %v681 = vpop.permute.xlu0 %680
  %v684 = vmul.f32 %v671, %v679
  %v685 = vmul.f32 %v673, %v681
  %688 = vrot.lane.b32.xlu0 %v684, 64
  %v689 = vpop.permute.xlu0 %688
  %690 = vrot.lane.b32.xlu0 %v685, 64
  %v691 = vpop.permute.xlu0 %690
  %v694 = vadd.f32 %v136, %v689
  %v695 = vadd.f32 %v141, %v691
  %v696 = vtanh.pop %v694
  %v697 = vtanh.pop %v695
  %v698 = vsub.f32 1.0, %v671
  %v699 = vsub.f32 1.0, %v673
  %702 = vrot.lane.b32.xlu0 %v696, 96
  %v703 = vpop.permute.xlu0 %702
  %704 = vrot.lane.b32.xlu0 %v697, 96
  %v705 = vpop.permute.xlu0 %704
  %v708 = vmul.f32 %v698, %v703
  %v709 = vmul.f32 %v699, %v705
  %v710 = vrot.slane %v574, 7
  %v711 = vrot.slane %v575, 7
  %v714 = vmul.f32 %v671, %v710
  %v715 = vmul.f32 %v673, %v711
  %v716 = vadd.f32 %v708, %v714
  %v717 = vadd.f32 %v709, %v715
  %v720 = vrot.slane %v716, 3
  %v721 = vrot.slane %v717, 2
  %v722 = vsel %vm299, %v721, %v720
  %723 = vrot.lane.b32.xlu0 %v722, 96
  %v724 = vpop.permute.xlu0 %723
  %v725 = vsel %vm155, %v724, 0
  %727 = vmatprep.subr.mxu0 0.0
  %728 = vmatpush1.msra.mxu0 %v144
  %729 = vmatprep.subr.mxu0 0.0
  %730 = vmatpush1.msra.mxu0 %v145
  %731 = vmatprep.subr.mxu0 0.0
  %732 = vmatpush1.msra.mxu0 %v146
  %733 = vmatprep.subr.mxu0 0.0
  %734 = vmatpush1.msra.mxu0 %v147
  %735 = vmatprep.subr.mxu0 0.0
  %736 = vmatpush1.msra.mxu0 0.0
  %737 = vmatprep.subr.mxu0 0.0
  %738 = vmatpush1.msra.mxu0 0.0
  %739 = vmatprep.subr.mxu0 0.0
  %740 = vmatpush1.msra.mxu0 0.0
  %741 = vmatprep.subr.mxu0 0.0
  %742 = vmatpush1.msra.mxu0 0.0
  %743 = vmatprep.subr.mxu0 0.0
  %744 = vmatpush1.msra.mxu0 0.0
  %745 = vmatprep.subr.mxu0 0.0
  %746 = vmatpush1.msra.mxu0 0.0
  %747 = vmatprep.subr.mxu0 0.0
  %748 = vmatpush1.msra.mxu0 0.0
  %749 = vmatprep.subr.mxu0 0.0
  %750 = vmatpush1.msra.mxu0 0.0
  %751 = vmatprep.subr.mxu0 0.0
  %752 = vmatpush1.msra.mxu0 0.0
  %753 = vmatprep.subr.mxu0 0.0
  %754 = vmatpush1.msra.mxu0 0.0
  %755 = vmatprep.subr.mxu0 0.0
  %756 = vmatpush1.msra.mxu0 0.0
  %757 = vmatprep.subr.mxu0 0.0
  %758 = vmatpush1.msra.mxu0 0.0
  %759 = vmatprep.subr.mxu0 0.0
  %760 = vmatpush1.msra.mxu0 0.0
  %761 = vmatprep.subr.mxu0 0.0
  %762 = vmatpush1.msra.mxu0 0.0
  %763 = vmatprep.subr.mxu0 0.0
  %764 = vmatpush1.msra.mxu0 0.0
  %765 = vmatprep.subr.mxu0 0.0
  %766 = vmatpush1.msra.mxu0 0.0
  %767 = vmatprep.subr.mxu0 0.0
  %768 = vmatpush1.msra.mxu0 0.0
  %769 = vmatprep.subr.mxu0 0.0
  %770 = vmatpush1.msra.mxu0 0.0
  %771 = vmatprep.subr.mxu0 0.0
  %772 = vmatpush1.msra.mxu0 0.0
  %773 = vmatprep.subr.mxu0 0.0
  %774 = vmatpush1.msra.mxu0 0.0
  %775 = vmatprep.subr.mxu0 0.0
  %776 = vmatpush1.msra.mxu0 0.0
  %777 = vmatprep.subr.mxu0 0.0
  %778 = vmatpush1.msra.mxu0 0.0
  %779 = vmatprep.subr.mxu0 0.0
  %780 = vmatpush1.msra.mxu0 0.0
  %781 = vmatprep.subr.mxu0 0.0
  %782 = vmatpush1.msra.mxu0 0.0
  %783 = vmatprep.subr.mxu0 0.0
  %784 = vmatpush1.msra.mxu0 0.0
  %785 = vmatprep.subr.mxu0 0.0
  %786 = vmatpush1.msra.mxu0 0.0
  %787 = vmatprep.subr.mxu0 0.0
  %788 = vmatpush1.msra.mxu0 0.0
  %789 = vmatprep.subr.mxu0 0.0
  %790 = vmatpush1.msra.mxu0 0.0
  %791 = vmatprep.mubr.f32.mxu0 0.0
  %792 = vmatmul.mubr.f32.gmra.mrb[0].mxu0 %v725
  %v793 = vpop.f32.mrb[0].mxu0
  %v794 = vadd.f32 0.0, %v793
  %v795 = vpop.f32.mrb[0].mxu0
  %796 = vdwg.mxu0
  %v798 = vrot.slane %v794, 4
  %v799 = vrot.slane %v794, 5
  %v802 = vadd.f32 %v136, %v798
  %v803 = vadd.f32 %v141, %v799
  %v804 = vxor.u32 %v802, 2147483648
  %v805 = vxor.u32 %v803, 2147483648
  %v806 = vmul.f32 %v804, 1.442695
  %v807 = vpow.pop %v806
  %v808 = vmul.f32 %v805, 1.442695
  %v809 = vpow.pop %v808
  %v810 = vadd.f32 %v807, 1.0
  %v811 = vadd.f32 %v809, 1.0
  %v812 = vrcp.pop %v810
  %v813 = vmul.f32 1.0, %v812
  %v814 = vrcp.pop %v811
  %v815 = vmul.f32 1.0, %v814
  %v816 = vadd.f32 %v794, %v252
  %v818 = vrot.slane %v816, 4
  %v819 = vrot.slane %v816, 5
  %820 = vrot.lane.b32.xlu0 %v818, 64
  %v821 = vpop.permute.xlu0 %820
  %822 = vrot.lane.b32.xlu0 %v819, 64
  %v823 = vpop.permute.xlu0 %822
  %v826 = vmul.f32 %v813, %v821
  %v827 = vmul.f32 %v815, %v823
  %830 = vrot.lane.b32.xlu0 %v826, 64
  %v831 = vpop.permute.xlu0 %830
  %832 = vrot.lane.b32.xlu0 %v827, 64
  %v833 = vpop.permute.xlu0 %832
  %v836 = vadd.f32 %v136, %v831
  %v837 = vadd.f32 %v141, %v833
  %v838 = vtanh.pop %v836
  %v839 = vtanh.pop %v837
  %v840 = vsub.f32 1.0, %v813
  %v841 = vsub.f32 1.0, %v815
  %844 = vrot.lane.b32.xlu0 %v838, 96
  %v845 = vpop.permute.xlu0 %844
  %846 = vrot.lane.b32.xlu0 %v839, 96
  %v847 = vpop.permute.xlu0 %846
  %v850 = vmul.f32 %v840, %v845
  %v851 = vmul.f32 %v841, %v847
  %v852 = vrot.slane %v716, 7
  %v853 = vrot.slane %v717, 7
  %v856 = vmul.f32 %v813, %v852
  %v857 = vmul.f32 %v815, %v853
  %v858 = vadd.f32 %v850, %v856
  %v859 = vadd.f32 %v851, %v857
  %v862 = vrot.slane %v858, 4
  %v863 = vrot.slane %v859, 3
  %v864 = vsel %vm299, %v863, %v862
  %865 = vrot.lane.b32.xlu0 %v864, 96
  %v866 = vpop.permute.xlu0 %865
  %v867 = vsel %vm155, %v866, 0
  %869 = vmatprep.subr.mxu0 0.0
  %870 = vmatpush1.msra.mxu0 %v144
  %871 = vmatprep.subr.mxu0 0.0
  %872 = vmatpush1.msra.mxu0 %v145
  %873 = vmatprep.subr.mxu0 0.0
  %874 = vmatpush1.msra.mxu0 %v146
  %875 = vmatprep.subr.mxu0 0.0
  %876 = vmatpush1.msra.mxu0 %v147
  %877 = vmatprep.subr.mxu0 0.0
  %878 = vmatpush1.msra.mxu0 0.0
  %879 = vmatprep.subr.mxu0 0.0
  %880 = vmatpush1.msra.mxu0 0.0
  %881 = vmatprep.subr.mxu0 0.0
  %882 = vmatpush1.msra.mxu0 0.0
  %883 = vmatprep.subr.mxu0 0.0
  %884 = vmatpush1.msra.mxu0 0.0
  %885 = vmatprep.subr.mxu0 0.0
  %886 = vmatpush1.msra.mxu0 0.0
  %887 = vmatprep.subr.mxu0 0.0
  %888 = vmatpush1.msra.mxu0 0.0
  %889 = vmatprep.subr.mxu0 0.0
  %890 = vmatpush1.msra.mxu0 0.0
  %891 = vmatprep.subr.mxu0 0.0
  %892 = vmatpush1.msra.mxu0 0.0
  %893 = vmatprep.subr.mxu0 0.0
  %894 = vmatpush1.msra.mxu0 0.0
  %895 = vmatprep.subr.mxu0 0.0
  %896 = vmatpush1.msra.mxu0 0.0
  %897 = vmatprep.subr.mxu0 0.0
  %898 = vmatpush1.msra.mxu0 0.0
  %899 = vmatprep.subr.mxu0 0.0
  %900 = vmatpush1.msra.mxu0 0.0
  %901 = vmatprep.subr.mxu0 0.0
  %902 = vmatpush1.msra.mxu0 0.0
  %903 = vmatprep.subr.mxu0 0.0
  %904 = vmatpush1.msra.mxu0 0.0
  %905 = vmatprep.subr.mxu0 0.0
  %906 = vmatpush1.msra.mxu0 0.0
  %907 = vmatprep.subr.mxu0 0.0
  %908 = vmatpush1.msra.mxu0 0.0
  %909 = vmatprep.subr.mxu0 0.0
  %910 = vmatpush1.msra.mxu0 0.0
  %911 = vmatprep.subr.mxu0 0.0
  %912 = vmatpush1.msra.mxu0 0.0
  %913 = vmatprep.subr.mxu0 0.0
  %914 = vmatpush1.msra.mxu0 0.0
  %915 = vmatprep.subr.mxu0 0.0
  %916 = vmatpush1.msra.mxu0 0.0
  %917 = vmatprep.subr.mxu0 0.0
  %918 = vmatpush1.msra.mxu0 0.0
  %919 = vmatprep.subr.mxu0 0.0
  %920 = vmatpush1.msra.mxu0 0.0
  %921 = vmatprep.subr.mxu0 0.0
  %922 = vmatpush1.msra.mxu0 0.0
  %923 = vmatprep.subr.mxu0 0.0
  %924 = vmatpush1.msra.mxu0 0.0
  %925 = vmatprep.subr.mxu0 0.0
  %926 = vmatpush1.msra.mxu0 0.0
  %927 = vmatprep.subr.mxu0 0.0
  %928 = vmatpush1.msra.mxu0 0.0
  %929 = vmatprep.subr.mxu0 0.0
  %930 = vmatpush1.msra.mxu0 0.0
  %931 = vmatprep.subr.mxu0 0.0
  %932 = vmatpush1.msra.mxu0 0.0
  %933 = vmatprep.mubr.f32.mxu0 0.0
  %934 = vmatmul.mubr.f32.gmra.mrb[0].mxu0 %v867
  %v935 = vpop.f32.mrb[0].mxu0
  %v936 = vadd.f32 0.0, %v935
  %v937 = vpop.f32.mrb[0].mxu0
  %938 = vdwg.mxu0
  %v940 = vrot.slane %v936, 3
  %v941 = vrot.slane %v936, 4
  %v944 = vadd.f32 %v136, %v940
  %v945 = vadd.f32 %v141, %v941
  %v946 = vxor.u32 %v944, 2147483648
  %v947 = vxor.u32 %v945, 2147483648
  %v948 = vmul.f32 %v946, 1.442695
  %v949 = vpow.pop %v948
  %v950 = vmul.f32 %v947, 1.442695
  %v951 = vpow.pop %v950
  %v952 = vadd.f32 %v949, 1.0
  %v953 = vadd.f32 %v951, 1.0
  %v954 = vrcp.pop %v952
  %v955 = vmul.f32 1.0, %v954
  %v956 = vrcp.pop %v953
  %v957 = vmul.f32 1.0, %v956
  %v958 = vadd.f32 %v936, %v252
  %v960 = vrot.slane %v958, 3
  %v961 = vrot.slane %v958, 4
  %962 = vrot.lane.b32.xlu0 %v960, 64
  %v963 = vpop.permute.xlu0 %962
  %964 = vrot.lane.b32.xlu0 %v961, 64
  %v965 = vpop.permute.xlu0 %964
  %v968 = vmul.f32 %v955, %v963
  %v969 = vmul.f32 %v957, %v965
  %972 = vrot.lane.b32.xlu0 %v968, 64
  %v973 = vpop.permute.xlu0 %972
  %974 = vrot.lane.b32.xlu0 %v969, 64
  %v975 = vpop.permute.xlu0 %974
  %v978 = vadd.f32 %v136, %v973
  %v979 = vadd.f32 %v141, %v975
  %v980 = vtanh.pop %v978
  %v981 = vtanh.pop %v979
  %v982 = vsub.f32 1.0, %v955
  %v983 = vsub.f32 1.0, %v957
  %986 = vrot.lane.b32.xlu0 %v980, 96
  %v987 = vpop.permute.xlu0 %986
  %988 = vrot.lane.b32.xlu0 %v981, 96
  %v989 = vpop.permute.xlu0 %988
  %v992 = vmul.f32 %v982, %v987
  %v993 = vmul.f32 %v983, %v989
  %v994 = vrot.slane %v858, 7
  %v995 = vrot.slane %v859, 7
  %v998 = vmul.f32 %v955, %v994
  %v999 = vmul.f32 %v957, %v995
  %v1000 = vadd.f32 %v992, %v998
  %v1001 = vadd.f32 %v993, %v999
  %v1004 = vrot.slane %v1000, 5
  %v1005 = vrot.slane %v1001, 4
  %v1006 = vsel %vm299, %v1005, %v1004
  %1007 = vrot.lane.b32.xlu0 %v1006, 96
  %v1008 = vpop.permute.xlu0 %1007
  %v1009 = vsel %vm155, %v1008, 0
  %1011 = vmatprep.subr.mxu0 0.0
  %1012 = vmatpush1.msra.mxu0 %v144
  %1013 = vmatprep.subr.mxu0 0.0
  %1014 = vmatpush1.msra.mxu0 %v145
  %1015 = vmatprep.subr.mxu0 0.0
  %1016 = vmatpush1.msra.mxu0 %v146
  %1017 = vmatprep.subr.mxu0 0.0
  %1018 = vmatpush1.msra.mxu0 %v147
  %1019 = vmatprep.subr.mxu0 0.0
  %1020 = vmatpush1.msra.mxu0 0.0
  %1021 = vmatprep.subr.mxu0 0.0
  %1022 = vmatpush1.msra.mxu0 0.0
  %1023 = vmatprep.subr.mxu0 0.0
  %1024 = vmatpush1.msra.mxu0 0.0
  %1025 = vmatprep.subr.mxu0 0.0
  %1026 = vmatpush1.msra.mxu0 0.0
  %1027 = vmatprep.subr.mxu0 0.0
  %1028 = vmatpush1.msra.mxu0 0.0
  %1029 = vmatprep.subr.mxu0 0.0
  %1030 = vmatpush1.msra.mxu0 0.0
  %1031 = vmatprep.subr.mxu0 0.0
  %1032 = vmatpush1.msra.mxu0 0.0
  %1033 = vmatprep.subr.mxu0 0.0
  %1034 = vmatpush1.msra.mxu0 0.0
  %1035 = vmatprep.subr.mxu0 0.0
  %1036 = vmatpush1.msra.mxu0 0.0
  %1037 = vmatprep.subr.mxu0 0.0
  %1038 = vmatpush1.msra.mxu0 0.0
  %1039 = vmatprep.subr.mxu0 0.0
  %1040 = vmatpush1.msra.mxu0 0.0
  %1041 = vmatprep.subr.mxu0 0.0
  %1042 = vmatpush1.msra.mxu0 0.0
  %1043 = vmatprep.subr.mxu0 0.0
  %1044 = vmatpush1.msra.mxu0 0.0
  %1045 = vmatprep.subr.mxu0 0.0
  %1046 = vmatpush1.msra.mxu0 0.0
  %1047 = vmatprep.subr.mxu0 0.0
  %1048 = vmatpush1.msra.mxu0 0.0
  %1049 = vmatprep.subr.mxu0 0.0
  %1050 = vmatpush1.msra.mxu0 0.0
  %1051 = vmatprep.subr.mxu0 0.0
  %1052 = vmatpush1.msra.mxu0 0.0
  %1053 = vmatprep.subr.mxu0 0.0
  %1054 = vmatpush1.msra.mxu0 0.0
  %1055 = vmatprep.subr.mxu0 0.0
  %1056 = vmatpush1.msra.mxu0 0.0
  %1057 = vmatprep.subr.mxu0 0.0
  %1058 = vmatpush1.msra.mxu0 0.0
  %1059 = vmatprep.subr.mxu0 0.0
  %1060 = vmatpush1.msra.mxu0 0.0
  %1061 = vmatprep.subr.mxu0 0.0
  %1062 = vmatpush1.msra.mxu0 0.0
  %1063 = vmatprep.subr.mxu0 0.0
  %1064 = vmatpush1.msra.mxu0 0.0
  %1065 = vmatprep.subr.mxu0 0.0
  %1066 = vmatpush1.msra.mxu0 0.0
  %1067 = vmatprep.subr.mxu0 0.0
  %1068 = vmatpush1.msra.mxu0 0.0
  %1069 = vmatprep.subr.mxu0 0.0
  %1070 = vmatpush1.msra.mxu0 0.0
  %1071 = vmatprep.subr.mxu0 0.0
  %1072 = vmatpush1.msra.mxu0 0.0
  %1073 = vmatprep.subr.mxu0 0.0
  %1074 = vmatpush1.msra.mxu0 0.0
  %1075 = vmatprep.mubr.f32.mxu0 0.0
  %1076 = vmatmul.mubr.f32.gmra.mrb[0].mxu0 %v1009
  %v1077 = vpop.f32.mrb[0].mxu0
  %v1078 = vadd.f32 0.0, %v1077
  %v1079 = vpop.f32.mrb[0].mxu0
  %1080 = vdwg.mxu0
  %v1082 = vrot.slane %v1078, 2
  %v1083 = vrot.slane %v1078, 3
  %v1086 = vadd.f32 %v136, %v1082
  %v1087 = vadd.f32 %v141, %v1083
  %v1088 = vxor.u32 %v1086, 2147483648
  %v1089 = vxor.u32 %v1087, 2147483648
  %v1090 = vmul.f32 %v1088, 1.442695
  %v1091 = vpow.pop %v1090
  %v1092 = vmul.f32 %v1089, 1.442695
  %v1093 = vpow.pop %v1092
  %v1094 = vadd.f32 %v1091, 1.0
  %v1095 = vadd.f32 %v1093, 1.0
  %v1096 = vrcp.pop %v1094
  %v1097 = vmul.f32 1.0, %v1096
  %v1098 = vrcp.pop %v1095
  %v1099 = vmul.f32 1.0, %v1098
  %v1100 = vadd.f32 %v1078, %v252
  %v1102 = vrot.slane %v1100, 2
  %v1103 = vrot.slane %v1100, 3
  %1104 = vrot.lane.b32.xlu0 %v1102, 64
  %v1105 = vpop.permute.xlu0 %1104
  %1106 = vrot.lane.b32.xlu0 %v1103, 64
  %v1107 = vpop.permute.xlu0 %1106
  %v1110 = vmul.f32 %v1097, %v1105
  %v1111 = vmul.f32 %v1099, %v1107
  %1114 = vrot.lane.b32.xlu0 %v1110, 64
  %v1115 = vpop.permute.xlu0 %1114
  %1116 = vrot.lane.b32.xlu0 %v1111, 64
  %v1117 = vpop.permute.xlu0 %1116
  %v1120 = vadd.f32 %v136, %v1115
  %v1121 = vadd.f32 %v141, %v1117
  %v1122 = vtanh.pop %v1120
  %v1123 = vtanh.pop %v1121
  %v1124 = vsub.f32 1.0, %v1097
  %v1125 = vsub.f32 1.0, %v1099
  %1128 = vrot.lane.b32.xlu0 %v1122, 96
  %v1129 = vpop.permute.xlu0 %1128
  %1130 = vrot.lane.b32.xlu0 %v1123, 96
  %v1131 = vpop.permute.xlu0 %1130
  %v1134 = vmul.f32 %v1124, %v1129
  %v1135 = vmul.f32 %v1125, %v1131
  %v1136 = vrot.slane %v1000, 7
  %v1137 = vrot.slane %v1001, 7
  %v1140 = vmul.f32 %v1097, %v1136
  %v1141 = vmul.f32 %v1099, %v1137
  %v1142 = vadd.f32 %v1134, %v1140
  %v1143 = vadd.f32 %v1135, %v1141
  %v1146 = vrot.slane %v1142, 6
  %v1147 = vrot.slane %v1143, 5
  %v1148 = vsel %vm299, %v1147, %v1146
  %1149 = vrot.lane.b32.xlu0 %v1148, 96
  %v1150 = vpop.permute.xlu0 %1149
  %v1151 = vsel %vm155, %v1150, 0
  %1153 = vmatprep.subr.mxu0 0.0
  %1154 = vmatpush1.msra.mxu0 %v144
  %1155 = vmatprep.subr.mxu0 0.0
  %1156 = vmatpush1.msra.mxu0 %v145
  %1157 = vmatprep.subr.mxu0 0.0
  %1158 = vmatpush1.msra.mxu0 %v146
  %1159 = vmatprep.subr.mxu0 0.0
  %1160 = vmatpush1.msra.mxu0 %v147
  %1161 = vmatprep.subr.mxu0 0.0
  %1162 = vmatpush1.msra.mxu0 0.0
  %1163 = vmatprep.subr.mxu0 0.0
  %1164 = vmatpush1.msra.mxu0 0.0
  %1165 = vmatprep.subr.mxu0 0.0
  %1166 = vmatpush1.msra.mxu0 0.0
  %1167 = vmatprep.subr.mxu0 0.0
  %1168 = vmatpush1.msra.mxu0 0.0
  %1169 = vmatprep.subr.mxu0 0.0
  %1170 = vmatpush1.msra.mxu0 0.0
  %1171 = vmatprep.subr.mxu0 0.0
  %1172 = vmatpush1.msra.mxu0 0.0
  %1173 = vmatprep.subr.mxu0 0.0
  %1174 = vmatpush1.msra.mxu0 0.0
  %1175 = vmatprep.subr.mxu0 0.0
  %1176 = vmatpush1.msra.mxu0 0.0
  %1177 = vmatprep.subr.mxu0 0.0
  %1178 = vmatpush1.msra.mxu0 0.0
  %1179 = vmatprep.subr.mxu0 0.0
  %1180 = vmatpush1.msra.mxu0 0.0
  %1181 = vmatprep.subr.mxu0 0.0
  %1182 = vmatpush1.msra.mxu0 0.0
  %1183 = vmatprep.subr.mxu0 0.0
  %1184 = vmatpush1.msra.mxu0 0.0
  %1185 = vmatprep.subr.mxu0 0.0
  %1186 = vmatpush1.msra.mxu0 0.0
  %1187 = vmatprep.subr.mxu0 0.0
  %1188 = vmatpush1.msra.mxu0 0.0
  %1189 = vmatprep.subr.mxu0 0.0
  %1190 = vmatpush1.msra.mxu0 0.0
  %1191 = vmatprep.subr.mxu0 0.0
  %1192 = vmatpush1.msra.mxu0 0.0
  %1193 = vmatprep.subr.mxu0 0.0
  %1194 = vmatpush1.msra.mxu0 0.0
  %1195 = vmatprep.subr.mxu0 0.0
  %1196 = vmatpush1.msra.mxu0 0.0
  %1197 = vmatprep.subr.mxu0 0.0
  %1198 = vmatpush1.msra.mxu0 0.0
  %1199 = vmatprep.subr.mxu0 0.0
  %1200 = vmatpush1.msra.mxu0 0.0
  %1201 = vmatprep.subr.mxu0 0.0
  %1202 = vmatpush1.msra.mxu0 0.0
  %1203 = vmatprep.subr.mxu0 0.0
  %1204 = vmatpush1.msra.mxu0 0.0
  %1205 = vmatprep.subr.mxu0 0.0
  %1206 = vmatpush1.msra.mxu0 0.0
  %1207 = vmatprep.subr.mxu0 0.0
  %1208 = vmatpush1.msra.mxu0 0.0
  %1209 = vmatprep.subr.mxu0 0.0
  %1210 = vmatpush1.msra.mxu0 0.0
  %1211 = vmatprep.subr.mxu0 0.0
  %1212 = vmatpush1.msra.mxu0 0.0
  %1213 = vmatprep.subr.mxu0 0.0
  %1214 = vmatpush1.msra.mxu0 0.0
  %1215 = vmatprep.subr.mxu0 0.0
  %1216 = vmatpush1.msra.mxu0 0.0
  %1217 = vmatprep.mubr.f32.mxu0 0.0
  %1218 = vmatmul.mubr.f32.gmra.mrb[0].mxu0 %v1151
  %v1219 = vpop.f32.mrb[0].mxu0
  %v1220 = vadd.f32 0.0, %v1219
  %v1221 = vpop.f32.mrb[0].mxu0
  %1222 = vdwg.mxu0
  %v1224 = vrot.slane %v1220, 1
  %v1225 = vrot.slane %v1220, 2
  %v1228 = vadd.f32 %v136, %v1224
  %v1229 = vadd.f32 %v141, %v1225
  %v1230 = vxor.u32 %v1228, 2147483648
  %v1231 = vxor.u32 %v1229, 2147483648
  %v1232 = vmul.f32 %v1230, 1.442695
  %v1233 = vpow.pop %v1232
  %v1234 = vmul.f32 %v1231, 1.442695
  %v1235 = vpow.pop %v1234
  %v1236 = vadd.f32 %v1233, 1.0
  %v1237 = vadd.f32 %v1235, 1.0
  %v1238 = vrcp.pop %v1236
  %v1239 = vmul.f32 1.0, %v1238
  %v1240 = vrcp.pop %v1237
  %v1241 = vmul.f32 1.0, %v1240
  %v1242 = vadd.f32 %v1220, %v252
  %v1244 = vrot.slane %v1242, 1
  %v1245 = vrot.slane %v1242, 2
  %1246 = vrot.lane.b32.xlu0 %v1244, 64
  %v1247 = vpop.permute.xlu0 %1246
  %1248 = vrot.lane.b32.xlu0 %v1245, 64
  %v1249 = vpop.permute.xlu0 %1248
  %v1252 = vmul.f32 %v1239, %v1247
  %v1253 = vmul.f32 %v1241, %v1249
  %1256 = vrot.lane.b32.xlu0 %v1252, 64
  %v1257 = vpop.permute.xlu0 %1256
  %1258 = vrot.lane.b32.xlu0 %v1253, 64
  %v1259 = vpop.permute.xlu0 %1258
  %v1262 = vadd.f32 %v136, %v1257
  %v1263 = vadd.f32 %v141, %v1259
  %v1264 = vtanh.pop %v1262
  %v1265 = vtanh.pop %v1263
  %v1266 = vsub.f32 1.0, %v1239
  %v1267 = vsub.f32 1.0, %v1241
  %1270 = vrot.lane.b32.xlu0 %v1264, 96
  %v1271 = vpop.permute.xlu0 %1270
  %1272 = vrot.lane.b32.xlu0 %v1265, 96
  %v1273 = vpop.permute.xlu0 %1272
  %v1276 = vmul.f32 %v1266, %v1271
  %v1277 = vmul.f32 %v1267, %v1273
  %v1278 = vrot.slane %v1142, 7
  %v1279 = vrot.slane %v1143, 7
  %v1282 = vmul.f32 %v1239, %v1278
  %v1283 = vmul.f32 %v1241, %v1279
  %v1284 = vadd.f32 %v1276, %v1282
  %v1285 = vadd.f32 %v1277, %v1283
  %vm1286 = vcmask 1040384
  %v1287 = vsel %vm1286, %v294, %v433
  %v1288 = vsel %vm1286, %v295, %v434
  %vm1289 = vcmask 1041408
  %v1290 = vsel %vm1289, %v1287, %v574
  %v1291 = vsel %vm1289, %v1288, %v575
  %vm1292 = vcmask 1042432
  %v1293 = vsel %vm1292, %v1290, %v716
  %v1294 = vsel %vm1292, %v1291, %v717
  %vm1295 = vcmask 1043456
  %v1296 = vsel %vm1295, %v1293, %v858
  %v1297 = vsel %vm1295, %v1294, %v859
  %vm1298 = vcmask 1044480
  %v1299 = vsel %vm1298, %v1296, %v1000
  %v1300 = vsel %vm1298, %v1297, %v1001
  %vm1301 = vcmask 1045504
  %v1302 = vsel %vm1301, %v1299, %v1142
  %v1303 = vsel %vm1301, %v1300, %v1143
  %vm1304 = vcmask 1046528
  %v1305 = vsel %vm1304, %v1302, %v1284
  %v1306 = vsel %vm1304, %v1303, %v1285
  %v1307 = vld [vmem:[%s7] sm:$0xff]
  %v1308 = vld [vmem:[%s7 + $0x8] sm:$0xff]
  %v1309 = vld [vmem:[%s7 + $0x10] sm:$0xff]
  %v1310 = vld [vmem:[%s7 + $0x18] sm:$0xff]
  %v1311 = vld [vmem:[%s8] sm:$0x1]
  %v1313 = vlaneseq
  %v1314 = vshrl.u32 %v1313, 7
  %v1315 = vsub.s32 0, %v1314
  %v1316 = vrot.slane %v1311, %v1315
  %1320 = vrot.lane.b32.xlu0 %v1305, 96
  %v1321 = vpop.permute.xlu0 %1320
  %1322 = vrot.lane.b32.xlu0 %v1306, 96
  %v1323 = vpop.permute.xlu0 %1322
  %v1324 = vsel %vm155, %v1321, 0
  %v1326 = vsel %vm155, %v1323, 0
  %1328 = vmatprep.subr.mxu0 0.0
  %1329 = vmatpush1.msra.mxu0 %v1307
  %1330 = vmatprep.subr.mxu0 0.0
  %1331 = vmatpush1.msra.mxu0 %v1308
  %1332 = vmatprep.subr.mxu0 0.0
  %1333 = vmatpush1.msra.mxu0 %v1309
  %1334 = vmatprep.subr.mxu0 0.0
  %1335 = vmatpush1.msra.mxu0 %v1310
  %1336 = vmatprep.subr.mxu0 0.0
  %1337 = vmatpush1.msra.mxu0 0.0
  %1338 = vmatprep.subr.mxu0 0.0
  %1339 = vmatpush1.msra.mxu0 0.0
  %1340 = vmatprep.subr.mxu0 0.0
  %1341 = vmatpush1.msra.mxu0 0.0
  %1342 = vmatprep.subr.mxu0 0.0
  %1343 = vmatpush1.msra.mxu0 0.0
  %1344 = vmatprep.subr.mxu0 0.0
  %1345 = vmatpush1.msra.mxu0 0.0
  %1346 = vmatprep.subr.mxu0 0.0
  %1347 = vmatpush1.msra.mxu0 0.0
  %1348 = vmatprep.subr.mxu0 0.0
  %1349 = vmatpush1.msra.mxu0 0.0
  %1350 = vmatprep.subr.mxu0 0.0
  %1351 = vmatpush1.msra.mxu0 0.0
  %1352 = vmatprep.subr.mxu0 0.0
  %1353 = vmatpush1.msra.mxu0 0.0
  %1354 = vmatprep.subr.mxu0 0.0
  %1355 = vmatpush1.msra.mxu0 0.0
  %1356 = vmatprep.subr.mxu0 0.0
  %1357 = vmatpush1.msra.mxu0 0.0
  %1358 = vmatprep.subr.mxu0 0.0
  %1359 = vmatpush1.msra.mxu0 0.0
  %1360 = vmatprep.subr.mxu0 0.0
  %1361 = vmatpush1.msra.mxu0 0.0
  %1362 = vmatprep.subr.mxu0 0.0
  %1363 = vmatpush1.msra.mxu0 0.0
  %1364 = vmatprep.subr.mxu0 0.0
  %1365 = vmatpush1.msra.mxu0 0.0
  %1366 = vmatprep.subr.mxu0 0.0
  %1367 = vmatpush1.msra.mxu0 0.0
  %1368 = vmatprep.subr.mxu0 0.0
  %1369 = vmatpush1.msra.mxu0 0.0
  %1370 = vmatprep.subr.mxu0 0.0
  %1371 = vmatpush1.msra.mxu0 0.0
  %1372 = vmatprep.subr.mxu0 0.0
  %1373 = vmatpush1.msra.mxu0 0.0
  %1374 = vmatprep.subr.mxu0 0.0
  %1375 = vmatpush1.msra.mxu0 0.0
  %1376 = vmatprep.subr.mxu0 0.0
  %1377 = vmatpush1.msra.mxu0 0.0
  %1378 = vmatprep.subr.mxu0 0.0
  %1379 = vmatpush1.msra.mxu0 0.0
  %1380 = vmatprep.subr.mxu0 0.0
  %1381 = vmatpush1.msra.mxu0 0.0
  %1382 = vmatprep.subr.mxu0 0.0
  %1383 = vmatpush1.msra.mxu0 0.0
  %1384 = vmatprep.subr.mxu0 0.0
  %1385 = vmatpush1.msra.mxu0 0.0
  %1386 = vmatprep.subr.mxu0 0.0
  %1387 = vmatpush1.msra.mxu0 0.0
  %1388 = vmatprep.subr.mxu0 0.0
  %1389 = vmatpush1.msra.mxu0 0.0
  %1390 = vmatprep.subr.mxu0 0.0
  %1391 = vmatpush1.msra.mxu0 0.0
  %1392 = vmatprep.mubr.f32.mxu0 0.0
  %1393 = vmatmul.mubr.f32.gmra.mrb[0].mxu0 %v1324
  %v1394 = vpop.f32.mrb[0].mxu0
  %v1395 = vadd.f32 %v1316, %v1394
  %v1396 = vpop.f32.mrb[0].mxu0
  %1397 = vmatprep.mubr.f32.mxu0 0.0
  %1398 = vmatmul.mubr.f32.gmra.mrb[0].mxu0 %v1326
  %v1399 = vpop.f32.mrb[0].mxu0
  %v1400 = vadd.f32 %v1316, %v1399
  %v1401 = vpop.f32.mrb[0].mxu0
  %1402 = vdwg.mxu0
  %v1403 = vmax.f32 %v1395, 0.0
  %v1404 = vmax.f32 %v1400, 0.0
  %v1405 = vld [vmem:[%s9] sm:$0xff]
  %v1406 = vld [vmem:[%s9 + $0x8] sm:$0xff]
  %v1407 = vld [vmem:[%s9 + $0x10] sm:$0xff]
  %v1408 = vld [vmem:[%s9 + $0x18] sm:$0xff]
  %v1409 = vld [vmem:[%s10] sm:$0x1]
  %v1411 = vlaneseq
  %v1412 = vshrl.u32 %v1411, 7
  %v1413 = vsub.s32 0, %v1412
  %v1414 = vrot.slane %v1409, %v1413
  %v1417 = vsel %vm155, %v1403, 0
  %v1420 = vsel %vm155, %v1404, 0
  %1422 = vmatprep.subr.mxu0 0.0
  %1423 = vmatpush1.msra.mxu0 %v1405
  %1424 = vmatprep.subr.mxu0 0.0
  %1425 = vmatpush1.msra.mxu0 %v1406
  %1426 = vmatprep.subr.mxu0 0.0
  %1427 = vmatpush1.msra.mxu0 %v1407
  %1428 = vmatprep.subr.mxu0 0.0
  %1429 = vmatpush1.msra.mxu0 %v1408
  %1430 = vmatprep.subr.mxu0 0.0
  %1431 = vmatpush1.msra.mxu0 0.0
  %1432 = vmatprep.subr.mxu0 0.0
  %1433 = vmatpush1.msra.mxu0 0.0
  %1434 = vmatprep.subr.mxu0 0.0
  %1435 = vmatpush1.msra.mxu0 0.0
  %1436 = vmatprep.subr.mxu0 0.0
  %1437 = vmatpush1.msra.mxu0 0.0
  %1438 = vmatprep.subr.mxu0 0.0
  %1439 = vmatpush1.msra.mxu0 0.0
  %1440 = vmatprep.subr.mxu0 0.0
  %1441 = vmatpush1.msra.mxu0 0.0
  %1442 = vmatprep.subr.mxu0 0.0
  %1443 = vmatpush1.msra.mxu0 0.0
  %1444 = vmatprep.subr.mxu0 0.0
  %1445 = vmatpush1.msra.mxu0 0.0
  %1446 = vmatprep.subr.mxu0 0.0
  %1447 = vmatpush1.msra.mxu0 0.0
  %1448 = vmatprep.subr.mxu0 0.0
  %1449 = vmatpush1.msra.mxu0 0.0
  %1450 = vmatprep.subr.mxu0 0.0
  %1451 = vmatpush1.msra.mxu0 0.0
  %1452 = vmatprep.subr.mxu0 0.0
  %1453 = vmatpush1.msra.mxu0 0.0
  %1454 = vmatprep.subr.mxu0 0.0
  %1455 = vmatpush1.msra.mxu0 0.0
  %1456 = vmatprep.subr.mxu0 0.0
  %1457 = vmatpush1.msra.mxu0 0.0
  %1458 = vmatprep.subr.mxu0 0.0
  %1459 = vmatpush1.msra.mxu0 0.0
  %1460 = vmatprep.subr.mxu0 0.0
  %1461 = vmatpush1.msra.mxu0 0.0
  %1462 = vmatprep.subr.mxu0 0.0
  %1463 = vmatpush1.msra.mxu0 0.0
  %1464 = vmatprep.subr.mxu0 0.0
  %1465 = vmatpush1.msra.mxu0 0.0
  %1466 = vmatprep.subr.mxu0 0.0
  %1467 = vmatpush1.msra.mxu0 0.0
  %1468 = vmatprep.subr.mxu0 0.0
  %1469 = vmatpush1.msra.mxu0 0.0
  %1470 = vmatprep.subr.mxu0 0.0
  %1471 = vmatpush1.msra.mxu0 0.0
  %1472 = vmatprep.subr.mxu0 0.0
  %1473 = vmatpush1.msra.mxu0 0.0
  %1474 = vmatprep.subr.mxu0 0.0
  %1475 = vmatpush1.msra.mxu0 0.0
  %1476 = vmatprep.subr.mxu0 0.0
  %1477 = vmatpush1.msra.mxu0 0.0
  %1478 = vmatprep.subr.mxu0 0.0
  %1479 = vmatpush1.msra.mxu0 0.0
  %1480 = vmatprep.subr.mxu0 0.0
  %1481 = vmatpush1.msra.mxu0 0.0
  %1482 = vmatprep.subr.mxu0 0.0
  %1483 = vmatpush1.msra.mxu0 0.0
  %1484 = vmatprep.subr.mxu0 0.0
  %1485 = vmatpush1.msra.mxu0 0.0
  %1486 = vmatprep.mubr.f32.mxu0 0.0
  %1487 = vmatmul.mubr.f32.gmra.mrb[0].mxu0 %v1417
  %v1488 = vpop.f32.mrb[0].mxu0
  %v1489 = vadd.f32 %v1414, %v1488
  %v1490 = vpop.f32.mrb[0].mxu0
  %1491 = vmatprep.mubr.f32.mxu0 0.0
  %1492 = vmatmul.mubr.f32.gmra.mrb[0].mxu0 %v1420
  %v1493 = vpop.f32.mrb[0].mxu0
  %v1494 = vadd.f32 %v1414, %v1493
  %v1495 = vpop.f32.mrb[0].mxu0
  %1496 = vdwg.mxu0
  %v1497 = vlaneseq
  %v1498 = vand.u32 %v1497, 127
  %vm1499 = vcmp.ge.s32.totalorder %v1498, 8
  %vm1500 = vcmp.lt.s32.totalorder %v1498, 16
  %vm1501 = vmand %vm1499, %vm1500
  %vm1502 = vcmp.gt.f32.partialorder %v1489, 20.0
  %vm1503 = vcmp.gt.f32.partialorder %v1494, 20.0
  %v1504 = vmin.f32 %v1489, 20.0
  %v1505 = vmin.f32 %v1494, 20.0
  %v1506 = vmul.f32 %v1504, 1.442695
  %v1507 = vpow.pop %v1506
  %v1508 = vmul.f32 %v1505, 1.442695
  %v1509 = vpow.pop %v1508
  %v1510 = vadd.f32 %v1507, 1.0
  %v1511 = vlog2.pop %v1510
  %v1512 = vmul.f32 %v1511, 0.6931472
  %v1513 = vmul.f32 -0.5, %v1507
  %v1514 = vadd.f32 %v1513, 1.0
  %v1515 = vmul.f32 %v1514, %v1507
  %v1516 = vand.u32 2147483647, %v1507
  %vm1517 = vcmp.lt.f32.partialorder %v1516, 0.0004427343
  %v1518 = vsel %vm1517, %v1515, %v1512
  %v1519 = vadd.f32 %v1509, 1.0
  %v1520 = vlog2.pop %v1519
  %v1521 = vmul.f32 %v1520, 0.6931472
  %v1522 = vmul.f32 -0.5, %v1509
  %v1523 = vadd.f32 %v1522, 1.0
  %v1524 = vmul.f32 %v1523, %v1509
  %v1525 = vand.u32 2147483647, %v1509
  %vm1526 = vcmp.lt.f32.partialorder %v1525, 0.0004427343
  %v1527 = vsel %vm1526, %v1524, %v1521
  %v1528 = vsel %vm1502, %v1489, %v1518
  %v1529 = vsel %vm1503, %v1494, %v1527
  %v1530 = vsel %vm1501, %v1528, %v1489
  %v1531 = vsel %vm1501, %v1529, %v1494
  %1532 = vst [vmem:[%s11] sm:$0xff] %v1530
  %1533 = vst [vmem:[%s11 + $0x8] sm:$0xff] %v1531
  // Predicated region
  $region46: #{decoder_rnn_forward.1} parent=0 // pred_check
    _
  $region47: #{decoder_rnn_forward.1} parent=0 // pred_check_branch
    %1535 = sbr.rel (0) target = $region49
  $region48: #{decoder_rnn_forward.1} parent=0 // pred_region
    _
  $region49: #{decoder_rnn_forward.1} parent=0 // pred_fallthru
    _
  // Predicated region
  $region50: #{decoder_rnn_forward.1} parent=0 // pred_check
    _
  $region51: #{decoder_rnn_forward.1} parent=0 // pred_check_branch
    %1537 = sbr.rel (0) target = $region53
  $region52: #{decoder_rnn_forward.1} parent=0 // pred_region
    _
  $region53: #{decoder_rnn_forward.1} parent=0 // pred_fallthru
    _

</llo_original>
